<compile_context>
chip_gen: v6e
topology: v6e:2x2x1
jax: 0.10.0
libtpu: 0.0.40
codegen_flags: <defaults>
</compile_context>

<pallas_src>
import functools

import jax
import jax.numpy as jnp
from jax.experimental import pallas as pl
from jax.experimental.pallas import tpu as pltpu


def _round_up(x, m):
    return ((x + m - 1) // m) * m


# ----------------------------------------------------------------------------
# Fused kernel: wavefront RNN stack + fused fc1 + MLP head.
# ----------------------------------------------------------------------------
def _fused_rnn_mlp_kernel(num_layers, T, B, Hp, has_tail, *refs):
    # refs = [x_tm, wih0, b0, wcomb, (btail), w1, b1, w2, b2, w3, b3, out]
    idx = 0
    x_ref = refs[idx]; idx += 1          # (T*B, Dp)   time-major flattened, lane-padded
    wih0_ref = refs[idx]; idx += 1       # (Dp, Hp)    layer-0 input projection (pre-T)
    b0_ref = refs[idx]; idx += 1         # (1, Hp)     b_ih0 + b_hh0
    wcomb_ref = refs[idx]; idx += 1      # (L*Hp, L*Hp) block upper-bidiagonal recurrence
    if has_tail:
        btail_ref = refs[idx]; idx += 1  # (1, (L-1)*Hp) combined biases for layers >= 1
    w1_ref = refs[idx]; idx += 1         # (T*Hp, 128)
    b1_ref = refs[idx]; idx += 1         # (1, 128)
    w2_ref = refs[idx]; idx += 1         # (128, 128)  output lanes 64..127 zero-padded
    b2_ref = refs[idx]; idx += 1         # (1, 128)
    w3_ref = refs[idx]; idx += 1         # (1, 128)    zero-padded row vector
    b3_ref = refs[idx]; idx += 1         # (1, 1)
    o_ref = refs[idx]                    # (B, 1)

    L = num_layers
    W = L * Hp
    f32 = jnp.float32

    # Layer-0 input projection hoisted over all T steps: one matmul, includes its bias.
    xproj = jnp.dot(x_ref[...], wih0_ref[...], preferred_element_type=f32) + b0_ref[...]

    wcomb = wcomb_ref[...]
    if has_tail:
        # Hoisted broadcast (JAX does not CSE broadcast_in_dim inside the unrolled loop).
        bias_tail = jnp.broadcast_to(btail_ref[...], (B, W - Hp))
    zeros_slot0 = jnp.zeros((B, Hp), f32)

    # fc1 accumulator lives in the recurrence shadow; start it at the fc1 bias.
    d1 = w1_ref.shape[1]
    fc1_acc = jnp.zeros((B, d1), f32) + b1_ref[...]

    # Wavefront state S(t) = [h_0(t), h_1(t-1), ..., h_{L-1}(t-L+1)], all lanes 128-dense.
    state = None
    for t in range(T + L - 1):                       # static unroll (small, static T & L)
        add0 = xproj[t * B:(t + 1) * B, :] if t < T else zeros_slot0
        add = jnp.concatenate([add0, bias_tail], axis=-1) if has_tail else add0

        if state is None:
            # Initial hidden state is zero -> recurrent matmul contributes nothing.
            new = jnp.tanh(add)
        else:
            new = jnp.tanh(jnp.dot(state, wcomb, preferred_element_type=f32) + add)

        # Warm-up: layers whose time index is still negative must present h_l(-1) == 0
        # to their own first real step, so zero those slots.
        if t < L - 1:
            keep = (t + 1) * Hp
            new = jnp.concatenate(
                [new[:, :keep], jnp.zeros((B, W - keep), f32)], axis=-1)
        state = new

        # Fold fc1 into the loop: as soon as the last layer's step s = t-(L-1) is valid,
        # accumulate its (B,Hp)x(Hp,128) contribution (off the recurrence critical path).
        if t >= L - 1:
            s = t - (L - 1)
            h_last = state[:, (L - 1) * Hp:]
            fc1_acc = fc1_acc + jnp.dot(
                h_last, w1_ref[s * Hp:(s + 1) * Hp, :], preferred_element_type=f32)

    # TODO(synk): nn.RNN inter-layer dropout is train-only; inference => no-op here.

    # MLP head: lane-dense (fc2 padded to 128 output lanes); fc3 is VPU mul + lane reduce.
    h1 = jnp.maximum(fc1_acc, 0.0)
    h2 = jnp.dot(h1, w2_ref[...], preferred_element_type=f32) + b2_ref[...]
    h2 = jnp.maximum(h2, 0.0)
    out = jnp.sum(h2 * w3_ref[...], axis=-1, keepdims=True) + b3_ref[...]
    o_ref[...] = out


# ----------------------------------------------------------------------------
# One-time weight preparation (hoisted out of the forward; cache & reuse).
# ----------------------------------------------------------------------------
def prepare_params(params, sequence_length):
    H = params["hidden"]
    Hp = _round_up(H, 128)
    L = len(params["rnn"])
    T = sequence_length

    # Layer-0 input projection, right-multiply form, zero-padded lanes.
    w_ih0, _, b_ih0, b_hh0 = params["rnn"][0]
    D = w_ih0.shape[1]
    Dp = _round_up(D, 128)
    wih0 = jnp.zeros((Dp, Hp), jnp.float32).at[:D, :H].set(w_ih0.T)
    b0 = jnp.zeros((1, Hp), jnp.float32).at[0, :H].set(b_ih0 + b_hh0)

    # Combined block upper-bidiagonal recurrence weight:
    #   block (l, l)   = Whh_l^T       (recurrent term)
    #   block (l-1, l) = Wih_l^T       (next layer's input projection, l >= 1)
    W = L * Hp
    wcomb = jnp.zeros((W, W), jnp.float32)
    for l, (w_ih, w_hh, _, _) in enumerate(params["rnn"]):
        wcomb = wcomb.at[l * Hp:l * Hp + H, l * Hp:l * Hp + H].set(w_hh.T)
        if l > 0:
            wcomb = wcomb.at[(l - 1) * Hp:(l - 1) * Hp + H,
                             l * Hp:l * Hp + H].set(w_ih.T)

    btail = None
    if L > 1:
        btail = jnp.zeros((1, (L - 1) * Hp), jnp.float32)
        for l in range(1, L):
            _, _, b_ih, b_hh = params["rnn"][l]
            btail = btail.at[0, (l - 1) * Hp:(l - 1) * Hp + H].set(b_ih + b_hh)

    # fc1: (128, H*T) -> (T*Hp, 128); rows for padded hidden lanes are zero.
    w1, b1 = params["fc1"]
    d1 = w1.shape[0]
    w1_p = jnp.pad(w1.T.reshape(T, H, d1),
                   ((0, 0), (0, Hp - H), (0, 0))).reshape(T * Hp, d1)
    b1_r = b1.reshape(1, d1)

    # fc2: pad the 64 output features to 128 lanes (zero columns) so the head is unmasked.
    w2, b2 = params["fc2"]
    d2 = w2.shape[0]
    d2p = _round_up(d2, 128)
    w2_p = jnp.zeros((d1, d2p), jnp.float32).at[:, :d2].set(w2.T)
    b2_p = jnp.zeros((1, d2p), jnp.float32).at[0, :d2].set(b2)

    # fc3 as a zero-padded row vector for the VPU multiply + lane reduction.
    w3, b3 = params["fc3"]
    w3_p = jnp.zeros((1, d2p), jnp.float32).at[0, :d2].set(w3[0])
    b3_r = b3.reshape(1, 1)

    return {
        "num_layers": L, "T": T, "Hp": Hp, "D": D, "Dp": Dp,
        "wih0": wih0, "b0": b0, "wcomb": wcomb, "btail": btail,
        "w1": w1_p, "b1": b1_r, "w2": w2_p, "b2": b2_p, "w3": w3_p, "b3": b3_r,
    }


# ----------------------------------------------------------------------------
# Forward wrapper: per-call work is only the tiny input transpose/pad + one pallas_call.
# ----------------------------------------------------------------------------
def rnn_model_forward(x, prepped):
    """x: (B, T, input_size) float32, batch-first like the PyTorch module."""
    B, T, D = x.shape
    L, Hp, Dp = prepped["num_layers"], prepped["Hp"], prepped["Dp"]
    assert T == prepped["T"] and D == prepped["D"]

    # Time-major flattened input: row (t * B + b); zero-pad feature lanes to Dp.
    x_tm = jnp.transpose(x, (1, 0, 2)).reshape(T * B, D).astype(jnp.float32)
    if Dp != D:
        x_tm = jnp.pad(x_tm, ((0, 0), (0, Dp - D)))

    has_tail = L > 1
    inputs = [x_tm, prepped["wih0"], prepped["b0"], prepped["wcomb"]]
    if has_tail:
        inputs.append(prepped["btail"])
    inputs += [prepped["w1"], prepped["b1"], prepped["w2"], prepped["b2"],
               prepped["w3"], prepped["b3"]]

    vmem = pl.BlockSpec(memory_space=pltpu.MemorySpace.VMEM)
    kernel = functools.partial(_fused_rnn_mlp_kernel, L, T, B, Hp, has_tail)
    return pl.pallas_call(
        kernel,
        out_shape=jax.ShapeDtypeStruct((B, 1), jnp.float32),
        in_specs=[vmem] * len(inputs),
        out_specs=vmem,
    )(*inputs)


# ----------------------------------------------------------------------------
# Pure-JAX reference (for a sanity check in __main__).
# ----------------------------------------------------------------------------
def _reference_forward(x, params):
    B, T, _ = x.shape
    H = params["hidden"]
    layer_in = x
    for (w_ih, w_hh, b_ih, b_hh) in params["rnn"]:
        h = jnp.zeros((B, H), jnp.float32)
        outs = []
        for t in range(T):
            h = jnp.tanh(layer_in[:, t, :] @ w_ih.T + b_ih + h @ w_hh.T + b_hh)
            outs.append(h)
        layer_in = jnp.stack(outs, axis=1)          # (B, T, H)
    flat = layer_in.reshape(B, T * H)
    w1, b1 = params["fc1"]; w2, b2 = params["fc2"]; w3, b3 = params["fc3"]
    y = jnp.maximum(flat @ w1.T + b1, 0.0)
    y = jnp.maximum(y @ w2.T + b2, 0.0)
    return y @ w3.T + b3


# ----------------------------------------------------------------------------
# Parameter init (deterministic, PyTorch-style uniform(-1/sqrt(fan), 1/sqrt(fan)))
# ----------------------------------------------------------------------------
def init_params(key, input_size, hidden_size, sequence_length, num_layers):
    params = {"rnn": [], "hidden": hidden_size}
    k_rnn = 1.0 / jnp.sqrt(hidden_size)
    for layer in range(num_layers):
        d_in = input_size if layer == 0 else hidden_size
        key, k1, k2, k3, k4 = jax.random.split(key, 5)
        w_ih = jax.random.uniform(k1, (hidden_size, d_in), jnp.float32, -k_rnn, k_rnn)
        w_hh = jax.random.uniform(k2, (hidden_size, hidden_size), jnp.float32, -k_rnn, k_rnn)
        b_ih = jax.random.uniform(k3, (hidden_size,), jnp.float32, -k_rnn, k_rnn)
        b_hh = jax.random.uniform(k4, (hidden_size,), jnp.float32, -k_rnn, k_rnn)
        params["rnn"].append((w_ih, w_hh, b_ih, b_hh))

    def linear(key, out_f, in_f):
        k = 1.0 / jnp.sqrt(in_f)
        kw, kb = jax.random.split(key)
        w = jax.random.uniform(kw, (out_f, in_f), jnp.float32, -k, k)
        b = jax.random.uniform(kb, (out_f,), jnp.float32, -k, k)
        return w, b

    key, kf1, kf2, kf3 = jax.random.split(key, 4)
    params["fc1"] = linear(kf1, 128, hidden_size * sequence_length)
    params["fc2"] = linear(kf2, 64, 128)
    params["fc3"] = linear(kf3, 1, 64)
    return params


if __name__ == "__main__":
    # Small shapes consistent with the module.
    batch = 2
    input_size = 8
    hidden_size = 32
    sequence_length = 8
    num_layers = 2

    key = jax.random.PRNGKey(0)
    key, kx, kp = jax.random.split(key, 3)
    x = jax.random.normal(kx, (batch, sequence_length, input_size), jnp.float32)
    params = init_params(kp, input_size, hidden_size, sequence_length, num_layers)

    # One-time weight preparation (hoisted out of the per-call path).
    prepped = prepare_params(params, sequence_length)
    prepped = jax.tree_util.tree_map(
        lambda a: jax.block_until_ready(a) if isinstance(a, jax.Array) else a, prepped)

    out = rnn_model_forward(x, prepped)
    out = jax.block_until_ready(out)
    assert out.shape == (batch, 1), out.shape

    # Sanity check vs a pure-JAX reference (loose tol: matmul precision paths differ).
    ref = _reference_forward(x, params)
    assert jnp.allclose(out, ref, atol=5e-2, rtol=5e-2), (out, ref)

    print("KERNEL_OK")
</pallas_src>

<mosaic_0001>
module attributes {stable_mosaic.version = 11 : i64} {
  func.func @_fused_rnn_mlp_kernel(%arg0: memref<16x128xf32, #tpu.memory_space<vmem>>, %arg1: memref<128x128xf32, #tpu.memory_space<vmem>>, %arg2: memref<1x128xf32, #tpu.memory_space<vmem>>, %arg3: memref<256x256xf32, #tpu.memory_space<vmem>>, %arg4: memref<1x128xf32, #tpu.memory_space<vmem>>, %arg5: memref<1024x128xf32, #tpu.memory_space<vmem>>, %arg6: memref<1x128xf32, #tpu.memory_space<vmem>>, %arg7: memref<128x128xf32, #tpu.memory_space<vmem>>, %arg8: memref<1x128xf32, #tpu.memory_space<vmem>>, %arg9: memref<1x128xf32, #tpu.memory_space<vmem>>, %arg10: memref<1x1xf32, #tpu.memory_space<vmem>>, %arg11: memref<2x1xf32, #tpu.memory_space<vmem>>) attributes {dimension_semantics = [], scalar_prefetch = 0 : i64, scratch_operands = 0 : i64, tpu.core_type = #tpu.core_type<tc>} {
    %c0 = arith.constant 0 : index
    %c0_0 = arith.constant 0 : index
    %0 = vector.load %arg0[%c0, %c0_0] : memref<16x128xf32, #tpu.memory_space<vmem>>, vector<16x128xf32>
    %c0_1 = arith.constant 0 : index
    %c0_2 = arith.constant 0 : index
    %1 = vector.load %arg1[%c0_1, %c0_2] : memref<128x128xf32, #tpu.memory_space<vmem>>, vector<128x128xf32>
    %cst = arith.constant dense<0.000000e+00> : vector<16x128xf32>
    %2 = tpu.matmul %0, %1, %cst {dimension_numbers = #tpu.dot_dimension_numbers<[1], [0], [0], [1], [0, 0, 1, 1], [], []>} : vector<16x128xf32>, vector<128x128xf32>, vector<16x128xf32> -> vector<16x128xf32>
    %c0_3 = arith.constant 0 : index
    %c0_4 = arith.constant 0 : index
    %3 = vector.load %arg2[%c0_3, %c0_4] : memref<1x128xf32, #tpu.memory_space<vmem>>, vector<1x128xf32>
    %4 = vector.broadcast %3 : vector<1x128xf32> to vector<16x128xf32>
    %5 = arith.addf %2, %4 : vector<16x128xf32>
    %c0_5 = arith.constant 0 : index
    %c0_6 = arith.constant 0 : index
    %6 = vector.load %arg3[%c0_5, %c0_6] : memref<256x256xf32, #tpu.memory_space<vmem>>, vector<256x256xf32>
    %c0_7 = arith.constant 0 : index
    %c0_8 = arith.constant 0 : index
    %7 = vector.load %arg4[%c0_7, %c0_8] : memref<1x128xf32, #tpu.memory_space<vmem>>, vector<1x128xf32>
    %8 = vector.shape_cast %7 : vector<1x128xf32> to vector<1x128xf32>
    %9 = vector.broadcast %8 : vector<1x128xf32> to vector<2x128xf32>
    %cst_9 = arith.constant 0.000000e+00 : f32
    %10 = vector.broadcast %cst_9 : f32 to vector<2x128xf32>
    %cst_10 = arith.constant 0.000000e+00 : f32
    %11 = vector.broadcast %cst_10 : f32 to vector<2x128xf32>
    %c0_11 = arith.constant 0 : index
    %c0_12 = arith.constant 0 : index
    %12 = vector.load %arg6[%c0_11, %c0_12] : memref<1x128xf32, #tpu.memory_space<vmem>>, vector<1x128xf32>
    %13 = vector.broadcast %12 : vector<1x128xf32> to vector<2x128xf32>
    %14 = arith.addf %11, %13 : vector<2x128xf32>
    %15 = vector.extract_strided_slice %5 {offsets = [0, 0], sizes = [2, 128], strides = [1, 1]} : vector<16x128xf32> to vector<2x128xf32>
    %16 = tpu.concatenate %15, %9 in 1 : vector<2x128xf32>, vector<2x128xf32> -> vector<2x256xf32>
    %17 = math.tanh %16 : vector<2x256xf32>
    %18 = vector.extract_strided_slice %17 {offsets = [0, 0], sizes = [2, 128], strides = [1, 1]} : vector<2x256xf32> to vector<2x128xf32>
    %cst_13 = arith.constant 0.000000e+00 : f32
    %19 = vector.broadcast %cst_13 : f32 to vector<2x128xf32>
    %20 = tpu.concatenate %18, %19 in 1 : vector<2x128xf32>, vector<2x128xf32> -> vector<2x256xf32>
    %21 = vector.extract_strided_slice %5 {offsets = [2, 0], sizes = [2, 128], strides = [1, 1]} : vector<16x128xf32> to vector<2x128xf32>
    %22 = tpu.concatenate %21, %9 in 1 : vector<2x128xf32>, vector<2x128xf32> -> vector<2x256xf32>
    %cst_14 = arith.constant dense<0.000000e+00> : vector<2x256xf32>
    %23 = tpu.matmul %20, %6, %cst_14 {dimension_numbers = #tpu.dot_dimension_numbers<[1], [0], [0], [1], [0, 0, 1, 1], [], []>} : vector<2x256xf32>, vector<256x256xf32>, vector<2x256xf32> -> vector<2x256xf32>
    %24 = arith.addf %23, %22 : vector<2x256xf32>
    %25 = math.tanh %24 : vector<2x256xf32>
    %26 = vector.extract_strided_slice %25 {offsets = [0, 128], sizes = [2, 128], strides = [1, 1]} : vector<2x256xf32> to vector<2x128xf32>
    %c0_15 = arith.constant 0 : index
    %c0_16 = arith.constant 0 : index
    %27 = vector.load %arg5[%c0_15, %c0_16] : memref<1024x128xf32, #tpu.memory_space<vmem>>, vector<128x128xf32>
    %cst_17 = arith.constant dense<0.000000e+00> : vector<2x128xf32>
    %28 = tpu.matmul %26, %27, %cst_17 {dimension_numbers = #tpu.dot_dimension_numbers<[1], [0], [0], [1], [0, 0, 1, 1], [], []>} : vector<2x128xf32>, vector<128x128xf32>, vector<2x128xf32> -> vector<2x128xf32>
    %29 = arith.addf %14, %28 : vector<2x128xf32>
    %30 = vector.extract_strided_slice %5 {offsets = [4, 0], sizes = [2, 128], strides = [1, 1]} : vector<16x128xf32> to vector<2x128xf32>
    %31 = tpu.concatenate %30, %9 in 1 : vector<2x128xf32>, vector<2x128xf32> -> vector<2x256xf32>
    %cst_18 = arith.constant dense<0.000000e+00> : vector<2x256xf32>
    %32 = tpu.matmul %25, %6, %cst_18 {dimension_numbers = #tpu.dot_dimension_numbers<[1], [0], [0], [1], [0, 0, 1, 1], [], []>} : vector<2x256xf32>, vector<256x256xf32>, vector<2x256xf32> -> vector<2x256xf32>
    %33 = arith.addf %32, %31 : vector<2x256xf32>
    %34 = math.tanh %33 : vector<2x256xf32>
    %35 = vector.extract_strided_slice %34 {offsets = [0, 128], sizes = [2, 128], strides = [1, 1]} : vector<2x256xf32> to vector<2x128xf32>
    %c128 = arith.constant 128 : index
    %c0_19 = arith.constant 0 : index
    %36 = vector.load %arg5[%c128, %c0_19] : memref<1024x128xf32, #tpu.memory_space<vmem>>, vector<128x128xf32>
    %cst_20 = arith.constant dense<0.000000e+00> : vector<2x128xf32>
    %37 = tpu.matmul %35, %36, %cst_20 {dimension_numbers = #tpu.dot_dimension_numbers<[1], [0], [0], [1], [0, 0, 1, 1], [], []>} : vector<2x128xf32>, vector<128x128xf32>, vector<2x128xf32> -> vector<2x128xf32>
    %38 = arith.addf %29, %37 : vector<2x128xf32>
    %39 = vector.extract_strided_slice %5 {offsets = [6, 0], sizes = [2, 128], strides = [1, 1]} : vector<16x128xf32> to vector<2x128xf32>
    %40 = tpu.concatenate %39, %9 in 1 : vector<2x128xf32>, vector<2x128xf32> -> vector<2x256xf32>
    %cst_21 = arith.constant dense<0.000000e+00> : vector<2x256xf32>
    %41 = tpu.matmul %34, %6, %cst_21 {dimension_numbers = #tpu.dot_dimension_numbers<[1], [0], [0], [1], [0, 0, 1, 1], [], []>} : vector<2x256xf32>, vector<256x256xf32>, vector<2x256xf32> -> vector<2x256xf32>
    %42 = arith.addf %41, %40 : vector<2x256xf32>
    %43 = math.tanh %42 : vector<2x256xf32>
    %44 = vector.extract_strided_slice %43 {offsets = [0, 128], sizes = [2, 128], strides = [1, 1]} : vector<2x256xf32> to vector<2x128xf32>
    %c256 = arith.constant 256 : index
    %c0_22 = arith.constant 0 : index
    %45 = vector.load %arg5[%c256, %c0_22] : memref<1024x128xf32, #tpu.memory_space<vmem>>, vector<128x128xf32>
    %cst_23 = arith.constant dense<0.000000e+00> : vector<2x128xf32>
    %46 = tpu.matmul %44, %45, %cst_23 {dimension_numbers = #tpu.dot_dimension_numbers<[1], [0], [0], [1], [0, 0, 1, 1], [], []>} : vector<2x128xf32>, vector<128x128xf32>, vector<2x128xf32> -> vector<2x128xf32>
    %47 = arith.addf %38, %46 : vector<2x128xf32>
    %48 = vector.extract_strided_slice %5 {offsets = [8, 0], sizes = [2, 128], strides = [1, 1]} : vector<16x128xf32> to vector<2x128xf32>
    %49 = tpu.concatenate %48, %9 in 1 : vector<2x128xf32>, vector<2x128xf32> -> vector<2x256xf32>
    %cst_24 = arith.constant dense<0.000000e+00> : vector<2x256xf32>
    %50 = tpu.matmul %43, %6, %cst_24 {dimension_numbers = #tpu.dot_dimension_numbers<[1], [0], [0], [1], [0, 0, 1, 1], [], []>} : vector<2x256xf32>, vector<256x256xf32>, vector<2x256xf32> -> vector<2x256xf32>
    %51 = arith.addf %50, %49 : vector<2x256xf32>
    %52 = math.tanh %51 : vector<2x256xf32>
    %53 = vector.extract_strided_slice %52 {offsets = [0, 128], sizes = [2, 128], strides = [1, 1]} : vector<2x256xf32> to vector<2x128xf32>
    %c384 = arith.constant 384 : index
    %c0_25 = arith.constant 0 : index
    %54 = vector.load %arg5[%c384, %c0_25] : memref<1024x128xf32, #tpu.memory_space<vmem>>, vector<128x128xf32>
    %cst_26 = arith.constant dense<0.000000e+00> : vector<2x128xf32>
    %55 = tpu.matmul %53, %54, %cst_26 {dimension_numbers = #tpu.dot_dimension_numbers<[1], [0], [0], [1], [0, 0, 1, 1], [], []>} : vector<2x128xf32>, vector<128x128xf32>, vector<2x128xf32> -> vector<2x128xf32>
    %56 = arith.addf %47, %55 : vector<2x128xf32>
    %57 = vector.extract_strided_slice %5 {offsets = [10, 0], sizes = [2, 128], strides = [1, 1]} : vector<16x128xf32> to vector<2x128xf32>
    %58 = tpu.concatenate %57, %9 in 1 : vector<2x128xf32>, vector<2x128xf32> -> vector<2x256xf32>
    %cst_27 = arith.constant dense<0.000000e+00> : vector<2x256xf32>
    %59 = tpu.matmul %52, %6, %cst_27 {dimension_numbers = #tpu.dot_dimension_numbers<[1], [0], [0], [1], [0, 0, 1, 1], [], []>} : vector<2x256xf32>, vector<256x256xf32>, vector<2x256xf32> -> vector<2x256xf32>
    %60 = arith.addf %59, %58 : vector<2x256xf32>
    %61 = math.tanh %60 : vector<2x256xf32>
    %62 = vector.extract_strided_slice %61 {offsets = [0, 128], sizes = [2, 128], strides = [1, 1]} : vector<2x256xf32> to vector<2x128xf32>
    %c512 = arith.constant 512 : index
    %c0_28 = arith.constant 0 : index
    %63 = vector.load %arg5[%c512, %c0_28] : memref<1024x128xf32, #tpu.memory_space<vmem>>, vector<128x128xf32>
    %cst_29 = arith.constant dense<0.000000e+00> : vector<2x128xf32>
    %64 = tpu.matmul %62, %63, %cst_29 {dimension_numbers = #tpu.dot_dimension_numbers<[1], [0], [0], [1], [0, 0, 1, 1], [], []>} : vector<2x128xf32>, vector<128x128xf32>, vector<2x128xf32> -> vector<2x128xf32>
    %65 = arith.addf %56, %64 : vector<2x128xf32>
    %66 = vector.extract_strided_slice %5 {offsets = [12, 0], sizes = [2, 128], strides = [1, 1]} : vector<16x128xf32> to vector<2x128xf32>
    %67 = tpu.concatenate %66, %9 in 1 : vector<2x128xf32>, vector<2x128xf32> -> vector<2x256xf32>
    %cst_30 = arith.constant dense<0.000000e+00> : vector<2x256xf32>
    %68 = tpu.matmul %61, %6, %cst_30 {dimension_numbers = #tpu.dot_dimension_numbers<[1], [0], [0], [1], [0, 0, 1, 1], [], []>} : vector<2x256xf32>, vector<256x256xf32>, vector<2x256xf32> -> vector<2x256xf32>
    %69 = arith.addf %68, %67 : vector<2x256xf32>
    %70 = math.tanh %69 : vector<2x256xf32>
    %71 = vector.extract_strided_slice %70 {offsets = [0, 128], sizes = [2, 128], strides = [1, 1]} : vector<2x256xf32> to vector<2x128xf32>
    %c640 = arith.constant 640 : index
    %c0_31 = arith.constant 0 : index
    %72 = vector.load %arg5[%c640, %c0_31] : memref<1024x128xf32, #tpu.memory_space<vmem>>, vector<128x128xf32>
    %cst_32 = arith.constant dense<0.000000e+00> : vector<2x128xf32>
    %73 = tpu.matmul %71, %72, %cst_32 {dimension_numbers = #tpu.dot_dimension_numbers<[1], [0], [0], [1], [0, 0, 1, 1], [], []>} : vector<2x128xf32>, vector<128x128xf32>, vector<2x128xf32> -> vector<2x128xf32>
    %74 = arith.addf %65, %73 : vector<2x128xf32>
    %75 = vector.extract_strided_slice %5 {offsets = [14, 0], sizes = [2, 128], strides = [1, 1]} : vector<16x128xf32> to vector<2x128xf32>
    %76 = tpu.concatenate %75, %9 in 1 : vector<2x128xf32>, vector<2x128xf32> -> vector<2x256xf32>
    %cst_33 = arith.constant dense<0.000000e+00> : vector<2x256xf32>
    %77 = tpu.matmul %70, %6, %cst_33 {dimension_numbers = #tpu.dot_dimension_numbers<[1], [0], [0], [1], [0, 0, 1, 1], [], []>} : vector<2x256xf32>, vector<256x256xf32>, vector<2x256xf32> -> vector<2x256xf32>
    %78 = arith.addf %77, %76 : vector<2x256xf32>
    %79 = math.tanh %78 : vector<2x256xf32>
    %80 = vector.extract_strided_slice %79 {offsets = [0, 128], sizes = [2, 128], strides = [1, 1]} : vector<2x256xf32> to vector<2x128xf32>
    %c768 = arith.constant 768 : index
    %c0_34 = arith.constant 0 : index
    %81 = vector.load %arg5[%c768, %c0_34] : memref<1024x128xf32, #tpu.memory_space<vmem>>, vector<128x128xf32>
    %cst_35 = arith.constant dense<0.000000e+00> : vector<2x128xf32>
    %82 = tpu.matmul %80, %81, %cst_35 {dimension_numbers = #tpu.dot_dimension_numbers<[1], [0], [0], [1], [0, 0, 1, 1], [], []>} : vector<2x128xf32>, vector<128x128xf32>, vector<2x128xf32> -> vector<2x128xf32>
    %83 = arith.addf %74, %82 : vector<2x128xf32>
    %84 = tpu.concatenate %10, %9 in 1 : vector<2x128xf32>, vector<2x128xf32> -> vector<2x256xf32>
    %cst_36 = arith.constant dense<0.000000e+00> : vector<2x256xf32>
    %85 = tpu.matmul %79, %6, %cst_36 {dimension_numbers = #tpu.dot_dimension_numbers<[1], [0], [0], [1], [0, 0, 1, 1], [], []>} : vector<2x256xf32>, vector<256x256xf32>, vector<2x256xf32> -> vector<2x256xf32>
    %86 = arith.addf %85, %84 : vector<2x256xf32>
    %87 = math.tanh %86 : vector<2x256xf32>
    %88 = vector.extract_strided_slice %87 {offsets = [0, 128], sizes = [2, 128], strides = [1, 1]} : vector<2x256xf32> to vector<2x128xf32>
    %c896 = arith.constant 896 : index
    %c0_37 = arith.constant 0 : index
    %89 = vector.load %arg5[%c896, %c0_37] : memref<1024x128xf32, #tpu.memory_space<vmem>>, vector<128x128xf32>
    %cst_38 = arith.constant dense<0.000000e+00> : vector<2x128xf32>
    %90 = tpu.matmul %88, %89, %cst_38 {dimension_numbers = #tpu.dot_dimension_numbers<[1], [0], [0], [1], [0, 0, 1, 1], [], []>} : vector<2x128xf32>, vector<128x128xf32>, vector<2x128xf32> -> vector<2x128xf32>
    %91 = arith.addf %83, %90 : vector<2x128xf32>
    %cst_39 = arith.constant 0.000000e+00 : f32
    %92 = vector.broadcast %cst_39 : f32 to vector<2x128xf32>
    %93 = arith.maximumf %91, %92 : vector<2x128xf32>
    %c0_40 = arith.constant 0 : index
    %c0_41 = arith.constant 0 : index
    %94 = vector.load %arg7[%c0_40, %c0_41] : memref<128x128xf32, #tpu.memory_space<vmem>>, vector<128x128xf32>
    %cst_42 = arith.constant dense<0.000000e+00> : vector<2x128xf32>
    %95 = tpu.matmul %93, %94, %cst_42 {dimension_numbers = #tpu.dot_dimension_numbers<[1], [0], [0], [1], [0, 0, 1, 1], [], []>} : vector<2x128xf32>, vector<128x128xf32>, vector<2x128xf32> -> vector<2x128xf32>
    %c0_43 = arith.constant 0 : index
    %c0_44 = arith.constant 0 : index
    %96 = vector.load %arg8[%c0_43, %c0_44] : memref<1x128xf32, #tpu.memory_space<vmem>>, vector<1x128xf32>
    %97 = vector.broadcast %96 : vector<1x128xf32> to vector<2x128xf32>
    %98 = arith.addf %95, %97 : vector<2x128xf32>
    %cst_45 = arith.constant 0.000000e+00 : f32
    %99 = vector.broadcast %cst_45 : f32 to vector<2x128xf32>
    %100 = arith.maximumf %98, %99 : vector<2x128xf32>
    %c0_46 = arith.constant 0 : index
    %c0_47 = arith.constant 0 : index
    %101 = vector.load %arg9[%c0_46, %c0_47] : memref<1x128xf32, #tpu.memory_space<vmem>>, vector<1x128xf32>
    %102 = vector.broadcast %101 : vector<1x128xf32> to vector<2x128xf32>
    %103 = arith.mulf %100, %102 : vector<2x128xf32>
    %cst_48 = arith.constant dense<0.000000e+00> : vector<2xf32>
    %104 = vector.multi_reduction <add>, %103, %cst_48 [1] : vector<2x128xf32> to vector<2xf32>
    %105 = vector.shape_cast %104 : vector<2xf32> to vector<2x1xf32>
    %c0_49 = arith.constant 0 : index
    %c0_50 = arith.constant 0 : index
    %106 = vector.load %arg10[%c0_49, %c0_50] : memref<1x1xf32, #tpu.memory_space<vmem>>, vector<1x1xf32>
    %107 = vector.broadcast %106 : vector<1x1xf32> to vector<2x1xf32>
    %108 = arith.addf %105, %107 : vector<2x1xf32>
    %c0_51 = arith.constant 0 : index
    %c0_52 = arith.constant 0 : index
    %109 = vector.load %arg11[%c0_51, %c0_52] : memref<2x1xf32, #tpu.memory_space<vmem>>, vector<2x1xf32>
    tpu.vector_store %arg11[%c0_51, %c0_52], %108 {strides = array<i32>} : memref<2x1xf32, #tpu.memory_space<vmem>>, vector<2x1xf32>,
    return
  }
}

</mosaic_0001>

<llo_original>
// kernel: tpu_custom_call.1
$region0: #{tpu_custom_call.1}
  #allocation0 [shape = 'u32[]', space=smem, size = 0x4, offset = 0x4, fixed_abs, tag = 'smem constant byte address 0x4 - core index']
  #allocation1 [shape = 'u32[144,128]{1,0:T(1,128)}', space=vmem, size = 0x12000, scoped, tag = 'internal scratch']
  #allocation2 [shape = 'f32[1,1]{1,0:T(1,128)S(1)}', space=vmem, size = 0x200, scoped, tag = 'scoped memory for tpu_custom_call.1']
  %s0 = inlined_call_operand.hbm [shape: f32[16,128], index: 0, kind: input, shape index: {}]
  %s1 = inlined_call_operand.hbm [shape: f32[128,128], index: 1, kind: input, shape index: {}]
  %s2 = inlined_call_operand.vmem [shape: f32[1,128], index: 2, kind: input, shape index: {}]
  %s3 = inlined_call_operand.hbm [shape: f32[256,256], index: 3, kind: input, shape index: {}]
  %s4 = inlined_call_operand.vmem [shape: f32[1,128], index: 4, kind: input, shape index: {}]
  %s5 = inlined_call_operand.hbm [shape: f32[1024,128], index: 5, kind: input, shape index: {}]
  %s6 = inlined_call_operand.vmem [shape: f32[1,128], index: 6, kind: input, shape index: {}]
  %s7 = inlined_call_operand.hbm [shape: f32[128,128], index: 7, kind: input, shape index: {}]
  %s8 = inlined_call_operand.vmem [shape: f32[1,128], index: 8, kind: input, shape index: {}]
  %s9 = inlined_call_operand.vmem [shape: f32[1,128], index: 9, kind: input, shape index: {}]
  %s10 = inlined_call_operand.<no memory space> [shape: f32[1,1], index: 10, kind: input, shape index: {}]
  %s11 = inlined_call_operand.vmem [shape: f32[2,1], index: 11, kind: output, shape index: {}]
  %s12 = sld [smem:[#allocation0]]
  $region74: #{tpu_custom_call.1} parent=0
    _
  %s14 = ssub.s32 1, %s12
  %s15 = scalar_select 0, %s14, %s12
  %v16 = vstv %s10
  %17 = vst [vmem:[#allocation2] sm:$0x1] %v16
  $region1: #{tpu_custom_call.1} parent=0
    #allocation3 [shape = 'u8[8192]{0}', space=vmem, size = 0x2000, scoped, tag = 'input window, operand 0, single buffered']
    #allocation4 [shape = 's32[1]{0}', space=sflag, size = 0x4, scoped, tag = 'scoped memory for tpu_custom_call.1']
    #allocation5 [shape = 'u8[65536]{0}', space=vmem, size = 0x10000, scoped, tag = 'input window, operand 1, single buffered']
    #allocation6 [shape = 's32[1]{0}', space=sflag, size = 0x4, scoped, tag = 'scoped memory for tpu_custom_call.1']
    #allocation7 [shape = 'u8[262144]{0}', space=vmem, size = 0x40000, scoped, tag = 'input window, operand 3, single buffered']
    #allocation8 [shape = 'u8[524288]{0}', space=vmem, size = 0x80000, scoped, tag = 'input window, operand 5, single buffered']
    #allocation9 [shape = 's32[1]{0}', space=sflag, size = 0x4, scoped, tag = 'scoped memory for tpu_custom_call.1']
    #allocation10 [shape = 'u8[65536]{0}', space=vmem, size = 0x10000, scoped, tag = 'input window, operand 7, single buffered']
    %18 = vsyncpa [#allocation4], 0
    %19 = vsyncpa [#allocation6], 0
    %20 = vsyncpa [#allocation9], 0
    // Predicated region
    $region2: #{tpu_custom_call.1} parent=1 // pred_check
      _
    $region3: #{tpu_custom_call.1} parent=1 // pred_check_branch
      %22 = sbr.rel (0) target = $region5
    $region4: #{tpu_custom_call.1} parent=1 // pred_region
      %s24 = ssub.s32 256, 256
      %25 = vsyncadd [#allocation4], %s24
      %s26 = sshll.u32 [#allocation3], 4
      %s27 = int_to_ptr.vmem [resolvable:$true] %s26
      %32 = dma.hbm_to_vmem [thread:$0]  %s0, 256, %s27, [#allocation4], 128, 128, 8
    $region5: #{tpu_custom_call.1} parent=1 // pred_fallthru
      _
    // Predicated region
    $region6: #{tpu_custom_call.1} parent=1 // pred_check
      _
    $region7: #{tpu_custom_call.1} parent=1 // pred_check_branch
      %34 = sbr.rel (0) target = $region9
    $region8: #{tpu_custom_call.1} parent=1 // pred_region
      %s36 = ssub.s32 2048, 2048
      %37 = vsyncadd [#allocation6], %s36
      %s38 = sshll.u32 [#allocation5], 4
      %s39 = int_to_ptr.vmem [resolvable:$true] %s38
      %44 = dma.hbm_to_vmem [thread:$0]  %s1, 2048, %s39, [#allocation6], 128, 128, 8
    $region9: #{tpu_custom_call.1} parent=1 // pred_fallthru
      _
    // Predicated region
    $region10: #{tpu_custom_call.1} parent=1 // pred_check
      _
    $region11: #{tpu_custom_call.1} parent=1 // pred_check_branch
      %46 = sbr.rel (0) target = $region13
    $region12: #{tpu_custom_call.1} parent=1 // pred_region
      _
    $region13: #{tpu_custom_call.1} parent=1 // pred_fallthru
      _
    // Predicated region
    $region14: #{tpu_custom_call.1} parent=1 // pred_check
      _
    $region15: #{tpu_custom_call.1} parent=1 // pred_check_branch
      %48 = sbr.rel (0) target = $region17
    $region16: #{tpu_custom_call.1} parent=1 // pred_region
      %s50 = ssub.s32 8192, 8192
      %51 = vsyncadd [#allocation6], %s50
      %s52 = sshll.u32 [#allocation7], 4
      %s53 = int_to_ptr.vmem [resolvable:$true] %s52
      %58 = dma.hbm_to_vmem [thread:$0]  %s3, 8192, %s53, [#allocation6], 256, 256, 16
    $region17: #{tpu_custom_call.1} parent=1 // pred_fallthru
      _
    // Predicated region
    $region18: #{tpu_custom_call.1} parent=1 // pred_check
      _
    $region19: #{tpu_custom_call.1} parent=1 // pred_check_branch
      %60 = sbr.rel (0) target = $region21
    $region20: #{tpu_custom_call.1} parent=1 // pred_region
      _
    $region21: #{tpu_custom_call.1} parent=1 // pred_fallthru
      _
    // Predicated region
    $region22: #{tpu_custom_call.1} parent=1 // pred_check
      _
    $region23: #{tpu_custom_call.1} parent=1 // pred_check_branch
      %62 = sbr.rel (0) target = $region25
    $region24: #{tpu_custom_call.1} parent=1 // pred_region
      %s64 = ssub.s32 16384, 16384
      %65 = vsyncadd [#allocation9], %s64
      %s66 = sshll.u32 [#allocation8], 4
      %s67 = int_to_ptr.vmem [resolvable:$true] %s66
      %72 = dma.hbm_to_vmem [thread:$0]  %s5, 16384, %s67, [#allocation9], 128, 128, 8
    $region25: #{tpu_custom_call.1} parent=1 // pred_fallthru
      _
    // Predicated region
    $region26: #{tpu_custom_call.1} parent=1 // pred_check
      _
    $region27: #{tpu_custom_call.1} parent=1 // pred_check_branch
      %74 = sbr.rel (0) target = $region29
    $region28: #{tpu_custom_call.1} parent=1 // pred_region
      _
    $region29: #{tpu_custom_call.1} parent=1 // pred_fallthru
      _
    // Predicated region
    $region30: #{tpu_custom_call.1} parent=1 // pred_check
      _
    $region31: #{tpu_custom_call.1} parent=1 // pred_check_branch
      %76 = sbr.rel (0) target = $region33
    $region32: #{tpu_custom_call.1} parent=1 // pred_region
      %s78 = ssub.s32 2048, 2048
      %79 = vsyncadd [#allocation9], %s78
      %s80 = sshll.u32 [#allocation10], 4
      %s81 = int_to_ptr.vmem [resolvable:$true] %s80
      %86 = dma.hbm_to_vmem [thread:$0]  %s7, 2048, %s81, [#allocation9], 128, 128, 8
    $region33: #{tpu_custom_call.1} parent=1 // pred_fallthru
      _
    // Predicated region
    $region34: #{tpu_custom_call.1} parent=1 // pred_check
      _
    $region35: #{tpu_custom_call.1} parent=1 // pred_check_branch
      %88 = sbr.rel (0) target = $region37
    $region36: #{tpu_custom_call.1} parent=1 // pred_region
      _
    $region37: #{tpu_custom_call.1} parent=1 // pred_fallthru
      _
    // Predicated region
    $region38: #{tpu_custom_call.1} parent=1 // pred_check
      _
    $region39: #{tpu_custom_call.1} parent=1 // pred_check_branch
      %90 = sbr.rel (0) target = $region41
    $region40: #{tpu_custom_call.1} parent=1 // pred_region
      _
    $region41: #{tpu_custom_call.1} parent=1 // pred_fallthru
      _
    // Predicated region
    $region42: #{tpu_custom_call.1} parent=1 // pred_check
      _
    $region43: #{tpu_custom_call.1} parent=1 // pred_check_branch
      %92 = sbr.rel (0) target = $region45
    $region44: #{tpu_custom_call.1} parent=1 // pred_region
      _
    $region45: #{tpu_custom_call.1} parent=1 // pred_fallthru
      _
    // Predicated region
    $region46: #{tpu_custom_call.1} parent=1 // pred_check
      _
    $region47: #{tpu_custom_call.1} parent=1 // pred_check_branch
      %94 = sbr.rel (0) target = $region49
    $region48: #{tpu_custom_call.1} parent=1 // pred_region
      %95 = dma.done [#allocation4], 256
    $region49: #{tpu_custom_call.1} parent=1 // pred_fallthru
      _
    // Predicated region
    $region50: #{tpu_custom_call.1} parent=1 // pred_check
      _
    $region51: #{tpu_custom_call.1} parent=1 // pred_check_branch
      %97 = sbr.rel (0) target = $region53
    $region52: #{tpu_custom_call.1} parent=1 // pred_region
      %98 = dma.done [#allocation6], 2048
    $region53: #{tpu_custom_call.1} parent=1 // pred_fallthru
      _
    // Predicated region
    $region54: #{tpu_custom_call.1} parent=1 // pred_check
      _
    $region55: #{tpu_custom_call.1} parent=1 // pred_check_branch
      %100 = sbr.rel (0) target = $region57
    $region56: #{tpu_custom_call.1} parent=1 // pred_region
      %101 = dma.done [#allocation6], 8192
    $region57: #{tpu_custom_call.1} parent=1 // pred_fallthru
      _
    // Predicated region
    $region58: #{tpu_custom_call.1} parent=1 // pred_check
      _
    $region59: #{tpu_custom_call.1} parent=1 // pred_check_branch
      %103 = sbr.rel (0) target = $region61
    $region60: #{tpu_custom_call.1} parent=1 // pred_region
      %104 = dma.done [#allocation9], 16384
    $region61: #{tpu_custom_call.1} parent=1 // pred_fallthru
      _
    // Predicated region
    $region62: #{tpu_custom_call.1} parent=1 // pred_check
      _
    $region63: #{tpu_custom_call.1} parent=1 // pred_check_branch
      %106 = sbr.rel (0) target = $region65
    $region64: #{tpu_custom_call.1} parent=1 // pred_region
      %107 = dma.done [#allocation9], 2048
    $region65: #{tpu_custom_call.1} parent=1 // pred_fallthru
      _
    %v108 = vld [vmem:[#allocation3] sm:$0xff]
    %v109 = vld [vmem:[#allocation3 + $0x8] sm:$0xff]
    %v110 = vld [vmem:[#allocation5] sm:$0xff]
    %v111 = vld [vmem:[#allocation5 + $0x8] sm:$0xff]
    %v112 = vld [vmem:[#allocation5 + $0x10] sm:$0xff]
    %v113 = vld [vmem:[#allocation5 + $0x18] sm:$0xff]
    %v114 = vld [vmem:[#allocation5 + $0x20] sm:$0xff]
    %v115 = vld [vmem:[#allocation5 + $0x28] sm:$0xff]
    %v116 = vld [vmem:[#allocation5 + $0x30] sm:$0xff]
    %v117 = vld [vmem:[#allocation5 + $0x38] sm:$0xff]
    %v118 = vld [vmem:[#allocation5 + $0x40] sm:$0xff]
    %v119 = vld [vmem:[#allocation5 + $0x48] sm:$0xff]
    %v120 = vld [vmem:[#allocation5 + $0x50] sm:$0xff]
    %v121 = vld [vmem:[#allocation5 + $0x58] sm:$0xff]
    %v122 = vld [vmem:[#allocation5 + $0x60] sm:$0xff]
    %v123 = vld [vmem:[#allocation5 + $0x68] sm:$0xff]
    %v124 = vld [vmem:[#allocation5 + $0x70] sm:$0xff]
    %v125 = vld [vmem:[#allocation5 + $0x78] sm:$0xff]
    %v126 = vld [vmem:[%s2] sm:$0x1]
    %v128 = vlaneseq
    %v129 = vshrl.u32 %v128, 7
    %v130 = vsub.s32 0, %v129
    %v131 = vrot.slane %v126, %v130
    %133 = vmatprep.subr.mxu0 0.0
    %134 = vmatpush1.msra.mxu0 %v125
    %135 = vmatprep.subr.mxu0 0.0
    %136 = vmatpush1.msra.mxu0 %v124
    %137 = vmatprep.subr.mxu0 0.0
    %138 = vmatpush1.msra.mxu0 %v123
    %139 = vmatprep.subr.mxu0 0.0
    %140 = vmatpush1.msra.mxu0 %v122
    %141 = vmatprep.subr.mxu0 0.0
    %142 = vmatpush1.msra.mxu0 %v121
    %143 = vmatprep.subr.mxu0 0.0
    %144 = vmatpush1.msra.mxu0 %v120
    %145 = vmatprep.subr.mxu0 0.0
    %146 = vmatpush1.msra.mxu0 %v119
    %147 = vmatprep.subr.mxu0 0.0
    %148 = vmatpush1.msra.mxu0 %v118
    %149 = vmatprep.subr.mxu0 0.0
    %150 = vmatpush1.msra.mxu0 %v117
    %151 = vmatprep.subr.mxu0 0.0
    %152 = vmatpush1.msra.mxu0 %v116
    %153 = vmatprep.subr.mxu0 0.0
    %154 = vmatpush1.msra.mxu0 %v115
    %155 = vmatprep.subr.mxu0 0.0
    %156 = vmatpush1.msra.mxu0 %v114
    %157 = vmatprep.subr.mxu0 0.0
    %158 = vmatpush1.msra.mxu0 %v113
    %159 = vmatprep.subr.mxu0 0.0
    %160 = vmatpush1.msra.mxu0 %v112
    %161 = vmatprep.subr.mxu0 0.0
    %162 = vmatpush1.msra.mxu0 %v111
    %163 = vmatprep.subr.mxu0 0.0
    %164 = vmatpush1.msra.mxu0 %v110
    %165 = vmatprep.subr.mxu0 0.0
    %166 = vmatpush2.msra.mxu0 0.0
    %167 = vmatprep.subr.mxu0 0.0
    %168 = vmatpush2.msra.mxu0 0.0
    %169 = vmatprep.subr.mxu0 0.0
    %170 = vmatpush2.msra.mxu0 0.0
    %171 = vmatprep.subr.mxu0 0.0
    %172 = vmatpush2.msra.mxu0 0.0
    %173 = vmatprep.subr.mxu0 0.0
    %174 = vmatpush2.msra.mxu0 0.0
    %175 = vmatprep.subr.mxu0 0.0
    %176 = vmatpush2.msra.mxu0 0.0
    %177 = vmatprep.subr.mxu0 0.0
    %178 = vmatpush2.msra.mxu0 0.0
    %179 = vmatprep.subr.mxu0 0.0
    %180 = vmatpush2.msra.mxu0 0.0
    %181 = vmatprep.subr.mxu0 0.0
    %182 = vmatpush2.msra.mxu0 0.0
    %183 = vmatprep.subr.mxu0 0.0
    %184 = vmatpush2.msra.mxu0 0.0
    %185 = vmatprep.subr.mxu0 0.0
    %186 = vmatpush2.msra.mxu0 0.0
    %187 = vmatprep.subr.mxu0 0.0
    %188 = vmatpush2.msra.mxu0 0.0
    %189 = vmatprep.subr.mxu0 0.0
    %190 = vmatpush2.msra.mxu0 0.0
    %191 = vmatprep.subr.mxu0 0.0
    %192 = vmatpush2.msra.mxu0 0.0
    %193 = vmatprep.subr.mxu0 0.0
    %194 = vmatpush2.msra.mxu0 0.0
    %195 = vmatprep.subr.mxu0 0.0
    %196 = vmatpush2.msra.mxu0 0.0
    %197 = vmatprep.mubr.f32.mxu0 0.0
    %198 = vmatmul.mubr.f32.gmra.mxu0 %v108
    %v199 = vpop.f32.mrf.mxu0
    %v200 = vadd.f32 %v131, %v199
    %v201 = vpop.f32.mrf.mxu0
    %202 = vmatprep.mubr.f32.mxu0 0.0
    %203 = vmatmul.mubr.f32.gmra.mxu0 %v109
    %v204 = vpop.f32.mrf.mxu0
    %v205 = vadd.f32 %v131, %v204
    %v206 = vpop.f32.mrf.mxu0
    %207 = vdwg.mxu0
    %v208 = vld [vmem:[#allocation7] sm:$0xff]
    %v209 = vld [vmem:[#allocation7 + $0x8] sm:$0xff]
    %v210 = vld [vmem:[#allocation7 + $0x10] sm:$0xff]
    %v211 = vld [vmem:[#allocation7 + $0x18] sm:$0xff]
    %v212 = vld [vmem:[#allocation7 + $0x20] sm:$0xff]
    %v213 = vld [vmem:[#allocation7 + $0x28] sm:$0xff]
    %v214 = vld [vmem:[#allocation7 + $0x30] sm:$0xff]
    %v215 = vld [vmem:[#allocation7 + $0x38] sm:$0xff]
    %v216 = vld [vmem:[#allocation7 + $0x40] sm:$0xff]
    %v217 = vld [vmem:[#allocation7 + $0x48] sm:$0xff]
    %v218 = vld [vmem:[#allocation7 + $0x50] sm:$0xff]
    %v219 = vld [vmem:[#allocation7 + $0x58] sm:$0xff]
    %v220 = vld [vmem:[#allocation7 + $0x60] sm:$0xff]
    %v221 = vld [vmem:[#allocation7 + $0x68] sm:$0xff]
    %v222 = vld [vmem:[#allocation7 + $0x70] sm:$0xff]
    %v223 = vld [vmem:[#allocation7 + $0x78] sm:$0xff]
    %v224 = vld [vmem:[#allocation7 + $0x80] sm:$0xff]
    %v225 = vld [vmem:[#allocation7 + $0x88] sm:$0xff]
    %v226 = vld [vmem:[#allocation7 + $0x90] sm:$0xff]
    %v227 = vld [vmem:[#allocation7 + $0x98] sm:$0xff]
    %v228 = vld [vmem:[#allocation7 + $0xa0] sm:$0xff]
    %v229 = vld [vmem:[#allocation7 + $0xa8] sm:$0xff]
    %v230 = vld [vmem:[#allocation7 + $0xb0] sm:$0xff]
    %v231 = vld [vmem:[#allocation7 + $0xb8] sm:$0xff]
    %v232 = vld [vmem:[#allocation7 + $0xc0] sm:$0xff]
    %v233 = vld [vmem:[#allocation7 + $0xc8] sm:$0xff]
    %v234 = vld [vmem:[#allocation7 + $0xd0] sm:$0xff]
    %v235 = vld [vmem:[#allocation7 + $0xd8] sm:$0xff]
    %v236 = vld [vmem:[#allocation7 + $0xe0] sm:$0xff]
    %v237 = vld [vmem:[#allocation7 + $0xe8] sm:$0xff]
    %v238 = vld [vmem:[#allocation7 + $0xf0] sm:$0xff]
    %v239 = vld [vmem:[#allocation7 + $0xf8] sm:$0xff]
    %v240 = vld [vmem:[#allocation7 + $0x100] sm:$0xff]
    %v241 = vld [vmem:[#allocation7 + $0x108] sm:$0xff]
    %v242 = vld [vmem:[#allocation7 + $0x110] sm:$0xff]
    %v243 = vld [vmem:[#allocation7 + $0x118] sm:$0xff]
    %v244 = vld [vmem:[#allocation7 + $0x120] sm:$0xff]
    %v245 = vld [vmem:[#allocation7 + $0x128] sm:$0xff]
    %v246 = vld [vmem:[#allocation7 + $0x130] sm:$0xff]
    %v247 = vld [vmem:[#allocation7 + $0x138] sm:$0xff]
    %v248 = vld [vmem:[#allocation7 + $0x140] sm:$0xff]
    %v249 = vld [vmem:[#allocation7 + $0x148] sm:$0xff]
    %v250 = vld [vmem:[#allocation7 + $0x150] sm:$0xff]
    %v251 = vld [vmem:[#allocation7 + $0x158] sm:$0xff]
    %v252 = vld [vmem:[#allocation7 + $0x160] sm:$0xff]
    %v253 = vld [vmem:[#allocation7 + $0x168] sm:$0xff]
    %v254 = vld [vmem:[#allocation7 + $0x170] sm:$0xff]
    %v255 = vld [vmem:[#allocation7 + $0x178] sm:$0xff]
    %v256 = vld [vmem:[#allocation7 + $0x180] sm:$0xff]
    %v257 = vld [vmem:[#allocation7 + $0x188] sm:$0xff]
    %v258 = vld [vmem:[#allocation7 + $0x190] sm:$0xff]
    %v259 = vld [vmem:[#allocation7 + $0x198] sm:$0xff]
    %v260 = vld [vmem:[#allocation7 + $0x1a0] sm:$0xff]
    %v261 = vld [vmem:[#allocation7 + $0x1a8] sm:$0xff]
    %v262 = vld [vmem:[#allocation7 + $0x1b0] sm:$0xff]
    %v263 = vld [vmem:[#allocation7 + $0x1b8] sm:$0xff]
    %v264 = vld [vmem:[#allocation7 + $0x1c0] sm:$0xff]
    %v265 = vld [vmem:[#allocation7 + $0x1c8] sm:$0xff]
    %v266 = vld [vmem:[#allocation7 + $0x1d0] sm:$0xff]
    %v267 = vld [vmem:[#allocation7 + $0x1d8] sm:$0xff]
    %v268 = vld [vmem:[#allocation7 + $0x1e0] sm:$0xff]
    %v269 = vld [vmem:[#allocation7 + $0x1e8] sm:$0xff]
    %v270 = vld [vmem:[#allocation7 + $0x1f0] sm:$0xff]
    %v271 = vld [vmem:[#allocation7 + $0x1f8] sm:$0xff]
    %v272 = vld [vmem:[%s4] sm:$0x1]
    %v274 = vlaneseq
    %v275 = vshrl.u32 %v274, 7
    %v276 = vsub.s32 0, %v275
    %v277 = vrot.slane %v272, %v276
    %v279 = vld [vmem:[%s6] sm:$0x1]
    %v281 = vlaneseq
    %v282 = vshrl.u32 %v281, 7
    %v283 = vsub.s32 0, %v282
    %v284 = vrot.slane %v279, %v283
    %v286 = vadd.f32 %v284, 0.0
    %v287 = vtanh.pop %v200
    %v289 = vrot.slane %v200, 2
    %v290 = vrot.slane %v277, 2
    %293 = vmatprep.subr.mxu0 %v239
    %294 = vmatpush1.msra.mxu0 %v238
    %295 = vmatprep.subr.mxu0 %v237
    %296 = vmatpush1.msra.mxu0 %v236
    %297 = vmatprep.subr.mxu0 %v235
    %298 = vmatpush1.msra.mxu0 %v234
    %299 = vmatprep.subr.mxu0 %v233
    %300 = vmatpush1.msra.mxu0 %v232
    %301 = vmatprep.subr.mxu0 %v231
    %302 = vmatpush1.msra.mxu0 %v230
    %303 = vmatprep.subr.mxu0 %v229
    %304 = vmatpush1.msra.mxu0 %v228
    %305 = vmatprep.subr.mxu0 %v227
    %306 = vmatpush1.msra.mxu0 %v226
    %307 = vmatprep.subr.mxu0 %v225
    %308 = vmatpush1.msra.mxu0 %v224
    %309 = vmatprep.subr.mxu0 %v223
    %310 = vmatpush1.msra.mxu0 %v222
    %311 = vmatprep.subr.mxu0 %v221
    %312 = vmatpush1.msra.mxu0 %v220
    %313 = vmatprep.subr.mxu0 %v219
    %314 = vmatpush1.msra.mxu0 %v218
    %315 = vmatprep.subr.mxu0 %v217
    %316 = vmatpush1.msra.mxu0 %v216
    %317 = vmatprep.subr.mxu0 %v215
    %318 = vmatpush1.msra.mxu0 %v214
    %319 = vmatprep.subr.mxu0 %v213
    %320 = vmatpush1.msra.mxu0 %v212
    %321 = vmatprep.subr.mxu0 %v211
    %322 = vmatpush1.msra.mxu0 %v210
    %323 = vmatprep.subr.mxu0 %v209
    %324 = vmatpush1.msra.mxu0 %v208
    %325 = vmatprep.subr.mxu0 %v271
    %326 = vmatpush2.msra.mxu0 %v270
    %327 = vmatprep.subr.mxu0 %v269
    %328 = vmatpush2.msra.mxu0 %v268
    %329 = vmatprep.subr.mxu0 %v267
    %330 = vmatpush2.msra.mxu0 %v266
    %331 = vmatprep.subr.mxu0 %v265
    %332 = vmatpush2.msra.mxu0 %v264
    %333 = vmatprep.subr.mxu0 %v263
    %334 = vmatpush2.msra.mxu0 %v262
    %335 = vmatprep.subr.mxu0 %v261
    %336 = vmatpush2.msra.mxu0 %v260
    %337 = vmatprep.subr.mxu0 %v259
    %338 = vmatpush2.msra.mxu0 %v258
    %339 = vmatprep.subr.mxu0 %v257
    %340 = vmatpush2.msra.mxu0 %v256
    %341 = vmatprep.subr.mxu0 %v255
    %342 = vmatpush2.msra.mxu0 %v254
    %343 = vmatprep.subr.mxu0 %v253
    %344 = vmatpush2.msra.mxu0 %v252
    %345 = vmatprep.subr.mxu0 %v251
    %346 = vmatpush2.msra.mxu0 %v250
    %347 = vmatprep.subr.mxu0 %v249
    %348 = vmatpush2.msra.mxu0 %v248
    %349 = vmatprep.subr.mxu0 %v247
    %350 = vmatpush2.msra.mxu0 %v246
    %351 = vmatprep.subr.mxu0 %v245
    %352 = vmatpush2.msra.mxu0 %v244
    %353 = vmatprep.subr.mxu0 %v243
    %354 = vmatpush2.msra.mxu0 %v242
    %355 = vmatprep.subr.mxu0 %v241
    %356 = vmatpush2.msra.mxu0 %v240
    %357 = vmatprep.mubr.f32.mxu0 0.0
    %358 = vmatmul.mubr.f32.gmra.mxu0 %v287
    %v359 = vpop.f32.mrf.mxu0
    %v360 = vadd.f32 %v289, %v359
    %v361 = vpop.f32.mrf.mxu0
    %v362 = vadd.f32 %v290, %v361
    %363 = vdwg.mxu0
    %v364 = vtanh.pop %v360
    %v365 = vtanh.pop %v362
    %v366 = vld [vmem:[#allocation8] sm:$0xff]
    %v367 = vld [vmem:[#allocation8 + $0x8] sm:$0xff]
    %v368 = vld [vmem:[#allocation8 + $0x10] sm:$0xff]
    %v369 = vld [vmem:[#allocation8 + $0x18] sm:$0xff]
    %v370 = vld [vmem:[#allocation8 + $0x20] sm:$0xff]
    %v371 = vld [vmem:[#allocation8 + $0x28] sm:$0xff]
    %v372 = vld [vmem:[#allocation8 + $0x30] sm:$0xff]
    %v373 = vld [vmem:[#allocation8 + $0x38] sm:$0xff]
    %v374 = vld [vmem:[#allocation8 + $0x40] sm:$0xff]
    %v375 = vld [vmem:[#allocation8 + $0x48] sm:$0xff]
    %v376 = vld [vmem:[#allocation8 + $0x50] sm:$0xff]
    %v377 = vld [vmem:[#allocation8 + $0x58] sm:$0xff]
    %v378 = vld [vmem:[#allocation8 + $0x60] sm:$0xff]
    %v379 = vld [vmem:[#allocation8 + $0x68] sm:$0xff]
    %v380 = vld [vmem:[#allocation8 + $0x70] sm:$0xff]
    %v381 = vld [vmem:[#allocation8 + $0x78] sm:$0xff]
    %382 = vmatprep.subr.mxu0 0.0
    %383 = vmatpush1.msra.mxu0 %v381
    %384 = vmatprep.subr.mxu0 0.0
    %385 = vmatpush1.msra.mxu0 %v380
    %386 = vmatprep.subr.mxu0 0.0
    %387 = vmatpush1.msra.mxu0 %v379
    %388 = vmatprep.subr.mxu0 0.0
    %389 = vmatpush1.msra.mxu0 %v378
    %390 = vmatprep.subr.mxu0 0.0
    %391 = vmatpush1.msra.mxu0 %v377
    %392 = vmatprep.subr.mxu0 0.0
    %393 = vmatpush1.msra.mxu0 %v376
    %394 = vmatprep.subr.mxu0 0.0
    %395 = vmatpush1.msra.mxu0 %v375
    %396 = vmatprep.subr.mxu0 0.0
    %397 = vmatpush1.msra.mxu0 %v374
    %398 = vmatprep.subr.mxu0 0.0
    %399 = vmatpush1.msra.mxu0 %v373
    %400 = vmatprep.subr.mxu0 0.0
    %401 = vmatpush1.msra.mxu0 %v372
    %402 = vmatprep.subr.mxu0 0.0
    %403 = vmatpush1.msra.mxu0 %v371
    %404 = vmatprep.subr.mxu0 0.0
    %405 = vmatpush1.msra.mxu0 %v370
    %406 = vmatprep.subr.mxu0 0.0
    %407 = vmatpush1.msra.mxu0 %v369
    %408 = vmatprep.subr.mxu0 0.0
    %409 = vmatpush1.msra.mxu0 %v368
    %410 = vmatprep.subr.mxu0 0.0
    %411 = vmatpush1.msra.mxu0 %v367
    %412 = vmatprep.subr.mxu0 0.0
    %413 = vmatpush1.msra.mxu0 %v366
    %414 = vmatprep.subr.mxu0 0.0
    %415 = vmatpush2.msra.mxu0 0.0
    %416 = vmatprep.subr.mxu0 0.0
    %417 = vmatpush2.msra.mxu0 0.0
    %418 = vmatprep.subr.mxu0 0.0
    %419 = vmatpush2.msra.mxu0 0.0
    %420 = vmatprep.subr.mxu0 0.0
    %421 = vmatpush2.msra.mxu0 0.0
    %422 = vmatprep.subr.mxu0 0.0
    %423 = vmatpush2.msra.mxu0 0.0
    %424 = vmatprep.subr.mxu0 0.0
    %425 = vmatpush2.msra.mxu0 0.0
    %426 = vmatprep.subr.mxu0 0.0
    %427 = vmatpush2.msra.mxu0 0.0
    %428 = vmatprep.subr.mxu0 0.0
    %429 = vmatpush2.msra.mxu0 0.0
    %430 = vmatprep.subr.mxu0 0.0
    %431 = vmatpush2.msra.mxu0 0.0
    %432 = vmatprep.subr.mxu0 0.0
    %433 = vmatpush2.msra.mxu0 0.0
    %434 = vmatprep.subr.mxu0 0.0
    %435 = vmatpush2.msra.mxu0 0.0
    %436 = vmatprep.subr.mxu0 0.0
    %437 = vmatpush2.msra.mxu0 0.0
    %438 = vmatprep.subr.mxu0 0.0
    %439 = vmatpush2.msra.mxu0 0.0
    %440 = vmatprep.subr.mxu0 0.0
    %441 = vmatpush2.msra.mxu0 0.0
    %442 = vmatprep.subr.mxu0 0.0
    %443 = vmatpush2.msra.mxu0 0.0
    %444 = vmatprep.subr.mxu0 0.0
    %445 = vmatpush2.msra.mxu0 0.0
    %446 = vmatprep.mubr.f32.mxu0 0.0
    %447 = vmatmul.mubr.f32.gmra.mxu0 %v365
    %v448 = vpop.f32.mrf.mxu0
    %v449 = vadd.f32 0.0, %v448
    %v450 = vpop.f32.mrf.mxu0
    %451 = vdwg.mxu0
    %v452 = vadd.f32 %v286, %v449
    %v453 = vrot.slane %v200, 4
    %v454 = vrot.slane %v277, 4
    %457 = vmatprep.subr.mxu0 %v239
    %458 = vmatpush1.msra.mxu0 %v238
    %459 = vmatprep.subr.mxu0 %v237
    %460 = vmatpush1.msra.mxu0 %v236
    %461 = vmatprep.subr.mxu0 %v235
    %462 = vmatpush1.msra.mxu0 %v234
    %463 = vmatprep.subr.mxu0 %v233
    %464 = vmatpush1.msra.mxu0 %v232
    %465 = vmatprep.subr.mxu0 %v231
    %466 = vmatpush1.msra.mxu0 %v230
    %467 = vmatprep.subr.mxu0 %v229
    %468 = vmatpush1.msra.mxu0 %v228
    %469 = vmatprep.subr.mxu0 %v227
    %470 = vmatpush1.msra.mxu0 %v226
    %471 = vmatprep.subr.mxu0 %v225
    %472 = vmatpush1.msra.mxu0 %v224
    %473 = vmatprep.subr.mxu0 %v223
    %474 = vmatpush1.msra.mxu0 %v222
    %475 = vmatprep.subr.mxu0 %v221
    %476 = vmatpush1.msra.mxu0 %v220
    %477 = vmatprep.subr.mxu0 %v219
    %478 = vmatpush1.msra.mxu0 %v218
    %479 = vmatprep.subr.mxu0 %v217
    %480 = vmatpush1.msra.mxu0 %v216
    %481 = vmatprep.subr.mxu0 %v215
    %482 = vmatpush1.msra.mxu0 %v214
    %483 = vmatprep.subr.mxu0 %v213
    %484 = vmatpush1.msra.mxu0 %v212
    %485 = vmatprep.subr.mxu0 %v211
    %486 = vmatpush1.msra.mxu0 %v210
    %487 = vmatprep.subr.mxu0 %v209
    %488 = vmatpush1.msra.mxu0 %v208
    %489 = vmatprep.subr.mxu0 %v271
    %490 = vmatpush2.msra.mxu0 %v270
    %491 = vmatprep.subr.mxu0 %v269
    %492 = vmatpush2.msra.mxu0 %v268
    %493 = vmatprep.subr.mxu0 %v267
    %494 = vmatpush2.msra.mxu0 %v266
    %495 = vmatprep.subr.mxu0 %v265
    %496 = vmatpush2.msra.mxu0 %v264
    %497 = vmatprep.subr.mxu0 %v263
    %498 = vmatpush2.msra.mxu0 %v262
    %499 = vmatprep.subr.mxu0 %v261
    %500 = vmatpush2.msra.mxu0 %v260
    %501 = vmatprep.subr.mxu0 %v259
    %502 = vmatpush2.msra.mxu0 %v258
    %503 = vmatprep.subr.mxu0 %v257
    %504 = vmatpush2.msra.mxu0 %v256
    %505 = vmatprep.subr.mxu0 %v255
    %506 = vmatpush2.msra.mxu0 %v254
    %507 = vmatprep.subr.mxu0 %v253
    %508 = vmatpush2.msra.mxu0 %v252
    %509 = vmatprep.subr.mxu0 %v251
    %510 = vmatpush2.msra.mxu0 %v250
    %511 = vmatprep.subr.mxu0 %v249
    %512 = vmatpush2.msra.mxu0 %v248
    %513 = vmatprep.subr.mxu0 %v247
    %514 = vmatpush2.msra.mxu0 %v246
    %515 = vmatprep.subr.mxu0 %v245
    %516 = vmatpush2.msra.mxu0 %v244
    %517 = vmatprep.subr.mxu0 %v243
    %518 = vmatpush2.msra.mxu0 %v242
    %519 = vmatprep.subr.mxu0 %v241
    %520 = vmatpush2.msra.mxu0 %v240
    %521 = vmatprep.mubr.f32.mxu0 %v365
    %522 = vmatmul.mubr.f32.gmra.mxu0 %v364
    %v523 = vpop.f32.mrf.mxu0
    %v524 = vadd.f32 %v453, %v523
    %v525 = vpop.f32.mrf.mxu0
    %v526 = vadd.f32 %v454, %v525
    %527 = vdwg.mxu0
    %v528 = vtanh.pop %v524
    %v529 = vtanh.pop %v526
    %v530 = vld [vmem:[#allocation8 + $0x80] sm:$0xff]
    %v531 = vld [vmem:[#allocation8 + $0x88] sm:$0xff]
    %v532 = vld [vmem:[#allocation8 + $0x90] sm:$0xff]
    %v533 = vld [vmem:[#allocation8 + $0x98] sm:$0xff]
    %v534 = vld [vmem:[#allocation8 + $0xa0] sm:$0xff]
    %v535 = vld [vmem:[#allocation8 + $0xa8] sm:$0xff]
    %v536 = vld [vmem:[#allocation8 + $0xb0] sm:$0xff]
    %v537 = vld [vmem:[#allocation8 + $0xb8] sm:$0xff]
    %v538 = vld [vmem:[#allocation8 + $0xc0] sm:$0xff]
    %v539 = vld [vmem:[#allocation8 + $0xc8] sm:$0xff]
    %v540 = vld [vmem:[#allocation8 + $0xd0] sm:$0xff]
    %v541 = vld [vmem:[#allocation8 + $0xd8] sm:$0xff]
    %v542 = vld [vmem:[#allocation8 + $0xe0] sm:$0xff]
    %v543 = vld [vmem:[#allocation8 + $0xe8] sm:$0xff]
    %v544 = vld [vmem:[#allocation8 + $0xf0] sm:$0xff]
    %v545 = vld [vmem:[#allocation8 + $0xf8] sm:$0xff]
    %546 = vmatprep.subr.mxu0 0.0
    %547 = vmatpush1.msra.mxu0 %v545
    %548 = vmatprep.subr.mxu0 0.0
    %549 = vmatpush1.msra.mxu0 %v544
    %550 = vmatprep.subr.mxu0 0.0
    %551 = vmatpush1.msra.mxu0 %v543
    %552 = vmatprep.subr.mxu0 0.0
    %553 = vmatpush1.msra.mxu0 %v542
    %554 = vmatprep.subr.mxu0 0.0
    %555 = vmatpush1.msra.mxu0 %v541
    %556 = vmatprep.subr.mxu0 0.0
    %557 = vmatpush1.msra.mxu0 %v540
    %558 = vmatprep.subr.mxu0 0.0
    %559 = vmatpush1.msra.mxu0 %v539
    %560 = vmatprep.subr.mxu0 0.0
    %561 = vmatpush1.msra.mxu0 %v538
    %562 = vmatprep.subr.mxu0 0.0
    %563 = vmatpush1.msra.mxu0 %v537
    %564 = vmatprep.subr.mxu0 0.0
    %565 = vmatpush1.msra.mxu0 %v536
    %566 = vmatprep.subr.mxu0 0.0
    %567 = vmatpush1.msra.mxu0 %v535
    %568 = vmatprep.subr.mxu0 0.0
    %569 = vmatpush1.msra.mxu0 %v534
    %570 = vmatprep.subr.mxu0 0.0
    %571 = vmatpush1.msra.mxu0 %v533
    %572 = vmatprep.subr.mxu0 0.0
    %573 = vmatpush1.msra.mxu0 %v532
    %574 = vmatprep.subr.mxu0 0.0
    %575 = vmatpush1.msra.mxu0 %v531
    %576 = vmatprep.subr.mxu0 0.0
    %577 = vmatpush1.msra.mxu0 %v530
    %578 = vmatprep.subr.mxu0 0.0
    %579 = vmatpush2.msra.mxu0 0.0
    %580 = vmatprep.subr.mxu0 0.0
    %581 = vmatpush2.msra.mxu0 0.0
    %582 = vmatprep.subr.mxu0 0.0
    %583 = vmatpush2.msra.mxu0 0.0
    %584 = vmatprep.subr.mxu0 0.0
    %585 = vmatpush2.msra.mxu0 0.0
    %586 = vmatprep.subr.mxu0 0.0
    %587 = vmatpush2.msra.mxu0 0.0
    %588 = vmatprep.subr.mxu0 0.0
    %589 = vmatpush2.msra.mxu0 0.0
    %590 = vmatprep.subr.mxu0 0.0
    %591 = vmatpush2.msra.mxu0 0.0
    %592 = vmatprep.subr.mxu0 0.0
    %593 = vmatpush2.msra.mxu0 0.0
    %594 = vmatprep.subr.mxu0 0.0
    %595 = vmatpush2.msra.mxu0 0.0
    %596 = vmatprep.subr.mxu0 0.0
    %597 = vmatpush2.msra.mxu0 0.0
    %598 = vmatprep.subr.mxu0 0.0
    %599 = vmatpush2.msra.mxu0 0.0
    %600 = vmatprep.subr.mxu0 0.0
    %601 = vmatpush2.msra.mxu0 0.0
    %602 = vmatprep.subr.mxu0 0.0
    %603 = vmatpush2.msra.mxu0 0.0
    %604 = vmatprep.subr.mxu0 0.0
    %605 = vmatpush2.msra.mxu0 0.0
    %606 = vmatprep.subr.mxu0 0.0
    %607 = vmatpush2.msra.mxu0 0.0
    %608 = vmatprep.subr.mxu0 0.0
    %609 = vmatpush2.msra.mxu0 0.0
    %610 = vmatprep.mubr.f32.mxu0 0.0
    %611 = vmatmul.mubr.f32.gmra.mxu0 %v529
    %v612 = vpop.f32.mrf.mxu0
    %v613 = vadd.f32 0.0, %v612
    %v614 = vpop.f32.mrf.mxu0
    %615 = vdwg.mxu0
    %v616 = vadd.f32 %v452, %v613
    %v617 = vrot.slane %v200, 6
    %v618 = vrot.slane %v277, 6
    %621 = vmatprep.subr.mxu0 %v239
    %622 = vmatpush1.msra.mxu0 %v238
    %623 = vmatprep.subr.mxu0 %v237
    %624 = vmatpush1.msra.mxu0 %v236
    %625 = vmatprep.subr.mxu0 %v235
    %626 = vmatpush1.msra.mxu0 %v234
    %627 = vmatprep.subr.mxu0 %v233
    %628 = vmatpush1.msra.mxu0 %v232
    %629 = vmatprep.subr.mxu0 %v231
    %630 = vmatpush1.msra.mxu0 %v230
    %631 = vmatprep.subr.mxu0 %v229
    %632 = vmatpush1.msra.mxu0 %v228
    %633 = vmatprep.subr.mxu0 %v227
    %634 = vmatpush1.msra.mxu0 %v226
    %635 = vmatprep.subr.mxu0 %v225
    %636 = vmatpush1.msra.mxu0 %v224
    %637 = vmatprep.subr.mxu0 %v223
    %638 = vmatpush1.msra.mxu0 %v222
    %639 = vmatprep.subr.mxu0 %v221
    %640 = vmatpush1.msra.mxu0 %v220
    %641 = vmatprep.subr.mxu0 %v219
    %642 = vmatpush1.msra.mxu0 %v218
    %643 = vmatprep.subr.mxu0 %v217
    %644 = vmatpush1.msra.mxu0 %v216
    %645 = vmatprep.subr.mxu0 %v215
    %646 = vmatpush1.msra.mxu0 %v214
    %647 = vmatprep.subr.mxu0 %v213
    %648 = vmatpush1.msra.mxu0 %v212
    %649 = vmatprep.subr.mxu0 %v211
    %650 = vmatpush1.msra.mxu0 %v210
    %651 = vmatprep.subr.mxu0 %v209
    %652 = vmatpush1.msra.mxu0 %v208
    %653 = vmatprep.subr.mxu0 %v271
    %654 = vmatpush2.msra.mxu0 %v270
    %655 = vmatprep.subr.mxu0 %v269
    %656 = vmatpush2.msra.mxu0 %v268
    %657 = vmatprep.subr.mxu0 %v267
    %658 = vmatpush2.msra.mxu0 %v266
    %659 = vmatprep.subr.mxu0 %v265
    %660 = vmatpush2.msra.mxu0 %v264
    %661 = vmatprep.subr.mxu0 %v263
    %662 = vmatpush2.msra.mxu0 %v262
    %663 = vmatprep.subr.mxu0 %v261
    %664 = vmatpush2.msra.mxu0 %v260
    %665 = vmatprep.subr.mxu0 %v259
    %666 = vmatpush2.msra.mxu0 %v258
    %667 = vmatprep.subr.mxu0 %v257
    %668 = vmatpush2.msra.mxu0 %v256
    %669 = vmatprep.subr.mxu0 %v255
    %670 = vmatpush2.msra.mxu0 %v254
    %671 = vmatprep.subr.mxu0 %v253
    %672 = vmatpush2.msra.mxu0 %v252
    %673 = vmatprep.subr.mxu0 %v251
    %674 = vmatpush2.msra.mxu0 %v250
    %675 = vmatprep.subr.mxu0 %v249
    %676 = vmatpush2.msra.mxu0 %v248
    %677 = vmatprep.subr.mxu0 %v247
    %678 = vmatpush2.msra.mxu0 %v246
    %679 = vmatprep.subr.mxu0 %v245
    %680 = vmatpush2.msra.mxu0 %v244
    %681 = vmatprep.subr.mxu0 %v243
    %682 = vmatpush2.msra.mxu0 %v242
    %683 = vmatprep.subr.mxu0 %v241
    %684 = vmatpush2.msra.mxu0 %v240
    %685 = vmatprep.mubr.f32.mxu0 %v529
    %686 = vmatmul.mubr.f32.gmra.mxu0 %v528
    %v687 = vpop.f32.mrf.mxu0
    %v688 = vadd.f32 %v617, %v687
    %v689 = vpop.f32.mrf.mxu0
    %v690 = vadd.f32 %v618, %v689
    %691 = vdwg.mxu0
    %v692 = vtanh.pop %v688
    %v693 = vtanh.pop %v690
    %v694 = vld [vmem:[#allocation8 + $0x100] sm:$0xff]
    %v695 = vld [vmem:[#allocation8 + $0x108] sm:$0xff]
    %v696 = vld [vmem:[#allocation8 + $0x110] sm:$0xff]
    %v697 = vld [vmem:[#allocation8 + $0x118] sm:$0xff]
    %v698 = vld [vmem:[#allocation8 + $0x120] sm:$0xff]
    %v699 = vld [vmem:[#allocation8 + $0x128] sm:$0xff]
    %v700 = vld [vmem:[#allocation8 + $0x130] sm:$0xff]
    %v701 = vld [vmem:[#allocation8 + $0x138] sm:$0xff]
    %v702 = vld [vmem:[#allocation8 + $0x140] sm:$0xff]
    %v703 = vld [vmem:[#allocation8 + $0x148] sm:$0xff]
    %v704 = vld [vmem:[#allocation8 + $0x150] sm:$0xff]
    %v705 = vld [vmem:[#allocation8 + $0x158] sm:$0xff]
    %v706 = vld [vmem:[#allocation8 + $0x160] sm:$0xff]
    %v707 = vld [vmem:[#allocation8 + $0x168] sm:$0xff]
    %v708 = vld [vmem:[#allocation8 + $0x170] sm:$0xff]
    %v709 = vld [vmem:[#allocation8 + $0x178] sm:$0xff]
    %710 = vmatprep.subr.mxu0 0.0
    %711 = vmatpush1.msra.mxu0 %v709
    %712 = vmatprep.subr.mxu0 0.0
    %713 = vmatpush1.msra.mxu0 %v708
    %714 = vmatprep.subr.mxu0 0.0
    %715 = vmatpush1.msra.mxu0 %v707
    %716 = vmatprep.subr.mxu0 0.0
    %717 = vmatpush1.msra.mxu0 %v706
    %718 = vmatprep.subr.mxu0 0.0
    %719 = vmatpush1.msra.mxu0 %v705
    %720 = vmatprep.subr.mxu0 0.0
    %721 = vmatpush1.msra.mxu0 %v704
    %722 = vmatprep.subr.mxu0 0.0
    %723 = vmatpush1.msra.mxu0 %v703
    %724 = vmatprep.subr.mxu0 0.0
    %725 = vmatpush1.msra.mxu0 %v702
    %726 = vmatprep.subr.mxu0 0.0
    %727 = vmatpush1.msra.mxu0 %v701
    %728 = vmatprep.subr.mxu0 0.0
    %729 = vmatpush1.msra.mxu0 %v700
    %730 = vmatprep.subr.mxu0 0.0
    %731 = vmatpush1.msra.mxu0 %v699
    %732 = vmatprep.subr.mxu0 0.0
    %733 = vmatpush1.msra.mxu0 %v698
    %734 = vmatprep.subr.mxu0 0.0
    %735 = vmatpush1.msra.mxu0 %v697
    %736 = vmatprep.subr.mxu0 0.0
    %737 = vmatpush1.msra.mxu0 %v696
    %738 = vmatprep.subr.mxu0 0.0
    %739 = vmatpush1.msra.mxu0 %v695
    %740 = vmatprep.subr.mxu0 0.0
    %741 = vmatpush1.msra.mxu0 %v694
    %742 = vmatprep.subr.mxu0 0.0
    %743 = vmatpush2.msra.mxu0 0.0
    %744 = vmatprep.subr.mxu0 0.0
    %745 = vmatpush2.msra.mxu0 0.0
    %746 = vmatprep.subr.mxu0 0.0
    %747 = vmatpush2.msra.mxu0 0.0
    %748 = vmatprep.subr.mxu0 0.0
    %749 = vmatpush2.msra.mxu0 0.0
    %750 = vmatprep.subr.mxu0 0.0
    %751 = vmatpush2.msra.mxu0 0.0
    %752 = vmatprep.subr.mxu0 0.0
    %753 = vmatpush2.msra.mxu0 0.0
    %754 = vmatprep.subr.mxu0 0.0
    %755 = vmatpush2.msra.mxu0 0.0
    %756 = vmatprep.subr.mxu0 0.0
    %757 = vmatpush2.msra.mxu0 0.0
    %758 = vmatprep.subr.mxu0 0.0
    %759 = vmatpush2.msra.mxu0 0.0
    %760 = vmatprep.subr.mxu0 0.0
    %761 = vmatpush2.msra.mxu0 0.0
    %762 = vmatprep.subr.mxu0 0.0
    %763 = vmatpush2.msra.mxu0 0.0
    %764 = vmatprep.subr.mxu0 0.0
    %765 = vmatpush2.msra.mxu0 0.0
    %766 = vmatprep.subr.mxu0 0.0
    %767 = vmatpush2.msra.mxu0 0.0
    %768 = vmatprep.subr.mxu0 0.0
    %769 = vmatpush2.msra.mxu0 0.0
    %770 = vmatprep.subr.mxu0 0.0
    %771 = vmatpush2.msra.mxu0 0.0
    %772 = vmatprep.subr.mxu0 0.0
    %773 = vmatpush2.msra.mxu0 0.0
    %774 = vmatprep.mubr.f32.mxu0 0.0
    %775 = vmatmul.mubr.f32.gmra.mxu0 %v693
    %v776 = vpop.f32.mrf.mxu0
    %v777 = vadd.f32 0.0, %v776
    %v778 = vpop.f32.mrf.mxu0
    %779 = vdwg.mxu0
    %v780 = vadd.f32 %v616, %v777
    %781 = vmatprep.subr.mxu0 %v239
    %782 = vmatpush1.msra.mxu0 %v238
    %783 = vmatprep.subr.mxu0 %v237
    %784 = vmatpush1.msra.mxu0 %v236
    %785 = vmatprep.subr.mxu0 %v235
    %786 = vmatpush1.msra.mxu0 %v234
    %787 = vmatprep.subr.mxu0 %v233
    %788 = vmatpush1.msra.mxu0 %v232
    %789 = vmatprep.subr.mxu0 %v231
    %790 = vmatpush1.msra.mxu0 %v230
    %791 = vmatprep.subr.mxu0 %v229
    %792 = vmatpush1.msra.mxu0 %v228
    %793 = vmatprep.subr.mxu0 %v227
    %794 = vmatpush1.msra.mxu0 %v226
    %795 = vmatprep.subr.mxu0 %v225
    %796 = vmatpush1.msra.mxu0 %v224
    %797 = vmatprep.subr.mxu0 %v223
    %798 = vmatpush1.msra.mxu0 %v222
    %799 = vmatprep.subr.mxu0 %v221
    %800 = vmatpush1.msra.mxu0 %v220
    %801 = vmatprep.subr.mxu0 %v219
    %802 = vmatpush1.msra.mxu0 %v218
    %803 = vmatprep.subr.mxu0 %v217
    %804 = vmatpush1.msra.mxu0 %v216
    %805 = vmatprep.subr.mxu0 %v215
    %806 = vmatpush1.msra.mxu0 %v214
    %807 = vmatprep.subr.mxu0 %v213
    %808 = vmatpush1.msra.mxu0 %v212
    %809 = vmatprep.subr.mxu0 %v211
    %810 = vmatpush1.msra.mxu0 %v210
    %811 = vmatprep.subr.mxu0 %v209
    %812 = vmatpush1.msra.mxu0 %v208
    %813 = vmatprep.subr.mxu0 %v271
    %814 = vmatpush2.msra.mxu0 %v270
    %815 = vmatprep.subr.mxu0 %v269
    %816 = vmatpush2.msra.mxu0 %v268
    %817 = vmatprep.subr.mxu0 %v267
    %818 = vmatpush2.msra.mxu0 %v266
    %819 = vmatprep.subr.mxu0 %v265
    %820 = vmatpush2.msra.mxu0 %v264
    %821 = vmatprep.subr.mxu0 %v263
    %822 = vmatpush2.msra.mxu0 %v262
    %823 = vmatprep.subr.mxu0 %v261
    %824 = vmatpush2.msra.mxu0 %v260
    %825 = vmatprep.subr.mxu0 %v259
    %826 = vmatpush2.msra.mxu0 %v258
    %827 = vmatprep.subr.mxu0 %v257
    %828 = vmatpush2.msra.mxu0 %v256
    %829 = vmatprep.subr.mxu0 %v255
    %830 = vmatpush2.msra.mxu0 %v254
    %831 = vmatprep.subr.mxu0 %v253
    %832 = vmatpush2.msra.mxu0 %v252
    %833 = vmatprep.subr.mxu0 %v251
    %834 = vmatpush2.msra.mxu0 %v250
    %835 = vmatprep.subr.mxu0 %v249
    %836 = vmatpush2.msra.mxu0 %v248
    %837 = vmatprep.subr.mxu0 %v247
    %838 = vmatpush2.msra.mxu0 %v246
    %839 = vmatprep.subr.mxu0 %v245
    %840 = vmatpush2.msra.mxu0 %v244
    %841 = vmatprep.subr.mxu0 %v243
    %842 = vmatpush2.msra.mxu0 %v242
    %843 = vmatprep.subr.mxu0 %v241
    %844 = vmatpush2.msra.mxu0 %v240
    %845 = vmatprep.mubr.f32.mxu0 %v693
    %846 = vmatmul.mubr.f32.gmra.mxu0 %v692
    %v847 = vpop.f32.mrf.mxu0
    %v848 = vadd.f32 %v205, %v847
    %v849 = vpop.f32.mrf.mxu0
    %v850 = vadd.f32 %v277, %v849
    %851 = vdwg.mxu0
    %v852 = vtanh.pop %v848
    %v853 = vtanh.pop %v850
    %v854 = vld [vmem:[#allocation8 + $0x180] sm:$0xff]
    %v855 = vld [vmem:[#allocation8 + $0x188] sm:$0xff]
    %v856 = vld [vmem:[#allocation8 + $0x190] sm:$0xff]
    %v857 = vld [vmem:[#allocation8 + $0x198] sm:$0xff]
    %v858 = vld [vmem:[#allocation8 + $0x1a0] sm:$0xff]
    %v859 = vld [vmem:[#allocation8 + $0x1a8] sm:$0xff]
    %v860 = vld [vmem:[#allocation8 + $0x1b0] sm:$0xff]
    %v861 = vld [vmem:[#allocation8 + $0x1b8] sm:$0xff]
    %v862 = vld [vmem:[#allocation8 + $0x1c0] sm:$0xff]
    %v863 = vld [vmem:[#allocation8 + $0x1c8] sm:$0xff]
    %v864 = vld [vmem:[#allocation8 + $0x1d0] sm:$0xff]
    %v865 = vld [vmem:[#allocation8 + $0x1d8] sm:$0xff]
    %v866 = vld [vmem:[#allocation8 + $0x1e0] sm:$0xff]
    %v867 = vld [vmem:[#allocation8 + $0x1e8] sm:$0xff]
    %v868 = vld [vmem:[#allocation8 + $0x1f0] sm:$0xff]
    %v869 = vld [vmem:[#allocation8 + $0x1f8] sm:$0xff]
    %870 = vmatprep.subr.mxu0 0.0
    %871 = vmatpush1.msra.mxu0 %v869
    %872 = vmatprep.subr.mxu0 0.0
    %873 = vmatpush1.msra.mxu0 %v868
    %874 = vmatprep.subr.mxu0 0.0
    %875 = vmatpush1.msra.mxu0 %v867
    %876 = vmatprep.subr.mxu0 0.0
    %877 = vmatpush1.msra.mxu0 %v866
    %878 = vmatprep.subr.mxu0 0.0
    %879 = vmatpush1.msra.mxu0 %v865
    %880 = vmatprep.subr.mxu0 0.0
    %881 = vmatpush1.msra.mxu0 %v864
    %882 = vmatprep.subr.mxu0 0.0
    %883 = vmatpush1.msra.mxu0 %v863
    %884 = vmatprep.subr.mxu0 0.0
    %885 = vmatpush1.msra.mxu0 %v862
    %886 = vmatprep.subr.mxu0 0.0
    %887 = vmatpush1.msra.mxu0 %v861
    %888 = vmatprep.subr.mxu0 0.0
    %889 = vmatpush1.msra.mxu0 %v860
    %890 = vmatprep.subr.mxu0 0.0
    %891 = vmatpush1.msra.mxu0 %v859
    %892 = vmatprep.subr.mxu0 0.0
    %893 = vmatpush1.msra.mxu0 %v858
    %894 = vmatprep.subr.mxu0 0.0
    %895 = vmatpush1.msra.mxu0 %v857
    %896 = vmatprep.subr.mxu0 0.0
    %897 = vmatpush1.msra.mxu0 %v856
    %898 = vmatprep.subr.mxu0 0.0
    %899 = vmatpush1.msra.mxu0 %v855
    %900 = vmatprep.subr.mxu0 0.0
    %901 = vmatpush1.msra.mxu0 %v854
    %902 = vmatprep.subr.mxu0 0.0
    %903 = vmatpush2.msra.mxu0 0.0
    %904 = vmatprep.subr.mxu0 0.0
    %905 = vmatpush2.msra.mxu0 0.0
    %906 = vmatprep.subr.mxu0 0.0
    %907 = vmatpush2.msra.mxu0 0.0
    %908 = vmatprep.subr.mxu0 0.0
    %909 = vmatpush2.msra.mxu0 0.0
    %910 = vmatprep.subr.mxu0 0.0
    %911 = vmatpush2.msra.mxu0 0.0
    %912 = vmatprep.subr.mxu0 0.0
    %913 = vmatpush2.msra.mxu0 0.0
    %914 = vmatprep.subr.mxu0 0.0
    %915 = vmatpush2.msra.mxu0 0.0
    %916 = vmatprep.subr.mxu0 0.0
    %917 = vmatpush2.msra.mxu0 0.0
    %918 = vmatprep.subr.mxu0 0.0
    %919 = vmatpush2.msra.mxu0 0.0
    %920 = vmatprep.subr.mxu0 0.0
    %921 = vmatpush2.msra.mxu0 0.0
    %922 = vmatprep.subr.mxu0 0.0
    %923 = vmatpush2.msra.mxu0 0.0
    %924 = vmatprep.subr.mxu0 0.0
    %925 = vmatpush2.msra.mxu0 0.0
    %926 = vmatprep.subr.mxu0 0.0
    %927 = vmatpush2.msra.mxu0 0.0
    %928 = vmatprep.subr.mxu0 0.0
    %929 = vmatpush2.msra.mxu0 0.0
    %930 = vmatprep.subr.mxu0 0.0
    %931 = vmatpush2.msra.mxu0 0.0
    %932 = vmatprep.subr.mxu0 0.0
    %933 = vmatpush2.msra.mxu0 0.0
    %934 = vmatprep.mubr.f32.mxu0 0.0
    %935 = vmatmul.mubr.f32.gmra.mxu0 %v853
    %v936 = vpop.f32.mrf.mxu0
    %v937 = vadd.f32 0.0, %v936
    %v938 = vpop.f32.mrf.mxu0
    %939 = vdwg.mxu0
    %v940 = vadd.f32 %v780, %v937
    %v942 = vrot.slane %v205, 2
    %944 = vmatprep.subr.mxu0 %v239
    %945 = vmatpush1.msra.mxu0 %v238
    %946 = vmatprep.subr.mxu0 %v237
    %947 = vmatpush1.msra.mxu0 %v236
    %948 = vmatprep.subr.mxu0 %v235
    %949 = vmatpush1.msra.mxu0 %v234
    %950 = vmatprep.subr.mxu0 %v233
    %951 = vmatpush1.msra.mxu0 %v232
    %952 = vmatprep.subr.mxu0 %v231
    %953 = vmatpush1.msra.mxu0 %v230
    %954 = vmatprep.subr.mxu0 %v229
    %955 = vmatpush1.msra.mxu0 %v228
    %956 = vmatprep.subr.mxu0 %v227
    %957 = vmatpush1.msra.mxu0 %v226
    %958 = vmatprep.subr.mxu0 %v225
    %959 = vmatpush1.msra.mxu0 %v224
    %960 = vmatprep.subr.mxu0 %v223
    %961 = vmatpush1.msra.mxu0 %v222
    %962 = vmatprep.subr.mxu0 %v221
    %963 = vmatpush1.msra.mxu0 %v220
    %964 = vmatprep.subr.mxu0 %v219
    %965 = vmatpush1.msra.mxu0 %v218
    %966 = vmatprep.subr.mxu0 %v217
    %967 = vmatpush1.msra.mxu0 %v216
    %968 = vmatprep.subr.mxu0 %v215
    %969 = vmatpush1.msra.mxu0 %v214
    %970 = vmatprep.subr.mxu0 %v213
    %971 = vmatpush1.msra.mxu0 %v212
    %972 = vmatprep.subr.mxu0 %v211
    %973 = vmatpush1.msra.mxu0 %v210
    %974 = vmatprep.subr.mxu0 %v209
    %975 = vmatpush1.msra.mxu0 %v208
    %976 = vmatprep.subr.mxu0 %v271
    %977 = vmatpush2.msra.mxu0 %v270
    %978 = vmatprep.subr.mxu0 %v269
    %979 = vmatpush2.msra.mxu0 %v268
    %980 = vmatprep.subr.mxu0 %v267
    %981 = vmatpush2.msra.mxu0 %v266
    %982 = vmatprep.subr.mxu0 %v265
    %983 = vmatpush2.msra.mxu0 %v264
    %984 = vmatprep.subr.mxu0 %v263
    %985 = vmatpush2.msra.mxu0 %v262
    %986 = vmatprep.subr.mxu0 %v261
    %987 = vmatpush2.msra.mxu0 %v260
    %988 = vmatprep.subr.mxu0 %v259
    %989 = vmatpush2.msra.mxu0 %v258
    %990 = vmatprep.subr.mxu0 %v257
    %991 = vmatpush2.msra.mxu0 %v256
    %992 = vmatprep.subr.mxu0 %v255
    %993 = vmatpush2.msra.mxu0 %v254
    %994 = vmatprep.subr.mxu0 %v253
    %995 = vmatpush2.msra.mxu0 %v252
    %996 = vmatprep.subr.mxu0 %v251
    %997 = vmatpush2.msra.mxu0 %v250
    %998 = vmatprep.subr.mxu0 %v249
    %999 = vmatpush2.msra.mxu0 %v248
    %1000 = vmatprep.subr.mxu0 %v247
    %1001 = vmatpush2.msra.mxu0 %v246
    %1002 = vmatprep.subr.mxu0 %v245
    %1003 = vmatpush2.msra.mxu0 %v244
    %1004 = vmatprep.subr.mxu0 %v243
    %1005 = vmatpush2.msra.mxu0 %v242
    %1006 = vmatprep.subr.mxu0 %v241
    %1007 = vmatpush2.msra.mxu0 %v240
    %1008 = vmatprep.mubr.f32.mxu0 %v853
    %1009 = vmatmul.mubr.f32.gmra.mxu0 %v852
    %v1010 = vpop.f32.mrf.mxu0
    %v1011 = vadd.f32 %v942, %v1010
    %v1012 = vpop.f32.mrf.mxu0
    %v1013 = vadd.f32 %v290, %v1012
    %1014 = vdwg.mxu0
    %v1015 = vtanh.pop %v1011
    %v1016 = vtanh.pop %v1013
    %v1017 = vld [vmem:[#allocation8 + $0x200] sm:$0xff]
    %v1018 = vld [vmem:[#allocation8 + $0x208] sm:$0xff]
    %v1019 = vld [vmem:[#allocation8 + $0x210] sm:$0xff]
    %v1020 = vld [vmem:[#allocation8 + $0x218] sm:$0xff]
    %v1021 = vld [vmem:[#allocation8 + $0x220] sm:$0xff]
    %v1022 = vld [vmem:[#allocation8 + $0x228] sm:$0xff]
    %v1023 = vld [vmem:[#allocation8 + $0x230] sm:$0xff]
    %v1024 = vld [vmem:[#allocation8 + $0x238] sm:$0xff]
    %v1025 = vld [vmem:[#allocation8 + $0x240] sm:$0xff]
    %v1026 = vld [vmem:[#allocation8 + $0x248] sm:$0xff]
    %v1027 = vld [vmem:[#allocation8 + $0x250] sm:$0xff]
    %v1028 = vld [vmem:[#allocation8 + $0x258] sm:$0xff]
    %v1029 = vld [vmem:[#allocation8 + $0x260] sm:$0xff]
    %v1030 = vld [vmem:[#allocation8 + $0x268] sm:$0xff]
    %v1031 = vld [vmem:[#allocation8 + $0x270] sm:$0xff]
    %v1032 = vld [vmem:[#allocation8 + $0x278] sm:$0xff]
    %1033 = vmatprep.subr.mxu0 0.0
    %1034 = vmatpush1.msra.mxu0 %v1032
    %1035 = vmatprep.subr.mxu0 0.0
    %1036 = vmatpush1.msra.mxu0 %v1031
    %1037 = vmatprep.subr.mxu0 0.0
    %1038 = vmatpush1.msra.mxu0 %v1030
    %1039 = vmatprep.subr.mxu0 0.0
    %1040 = vmatpush1.msra.mxu0 %v1029
    %1041 = vmatprep.subr.mxu0 0.0
    %1042 = vmatpush1.msra.mxu0 %v1028
    %1043 = vmatprep.subr.mxu0 0.0
    %1044 = vmatpush1.msra.mxu0 %v1027
    %1045 = vmatprep.subr.mxu0 0.0
    %1046 = vmatpush1.msra.mxu0 %v1026
    %1047 = vmatprep.subr.mxu0 0.0
    %1048 = vmatpush1.msra.mxu0 %v1025
    %1049 = vmatprep.subr.mxu0 0.0
    %1050 = vmatpush1.msra.mxu0 %v1024
    %1051 = vmatprep.subr.mxu0 0.0
    %1052 = vmatpush1.msra.mxu0 %v1023
    %1053 = vmatprep.subr.mxu0 0.0
    %1054 = vmatpush1.msra.mxu0 %v1022
    %1055 = vmatprep.subr.mxu0 0.0
    %1056 = vmatpush1.msra.mxu0 %v1021
    %1057 = vmatprep.subr.mxu0 0.0
    %1058 = vmatpush1.msra.mxu0 %v1020
    %1059 = vmatprep.subr.mxu0 0.0
    %1060 = vmatpush1.msra.mxu0 %v1019
    %1061 = vmatprep.subr.mxu0 0.0
    %1062 = vmatpush1.msra.mxu0 %v1018
    %1063 = vmatprep.subr.mxu0 0.0
    %1064 = vmatpush1.msra.mxu0 %v1017
    %1065 = vmatprep.subr.mxu0 0.0
    %1066 = vmatpush2.msra.mxu0 0.0
    %1067 = vmatprep.subr.mxu0 0.0
    %1068 = vmatpush2.msra.mxu0 0.0
    %1069 = vmatprep.subr.mxu0 0.0
    %1070 = vmatpush2.msra.mxu0 0.0
    %1071 = vmatprep.subr.mxu0 0.0
    %1072 = vmatpush2.msra.mxu0 0.0
    %1073 = vmatprep.subr.mxu0 0.0
    %1074 = vmatpush2.msra.mxu0 0.0
    %1075 = vmatprep.subr.mxu0 0.0
    %1076 = vmatpush2.msra.mxu0 0.0
    %1077 = vmatprep.subr.mxu0 0.0
    %1078 = vmatpush2.msra.mxu0 0.0
    %1079 = vmatprep.subr.mxu0 0.0
    %1080 = vmatpush2.msra.mxu0 0.0
    %1081 = vmatprep.subr.mxu0 0.0
    %1082 = vmatpush2.msra.mxu0 0.0
    %1083 = vmatprep.subr.mxu0 0.0
    %1084 = vmatpush2.msra.mxu0 0.0
    %1085 = vmatprep.subr.mxu0 0.0
    %1086 = vmatpush2.msra.mxu0 0.0
    %1087 = vmatprep.subr.mxu0 0.0
    %1088 = vmatpush2.msra.mxu0 0.0
    %1089 = vmatprep.subr.mxu0 0.0
    %1090 = vmatpush2.msra.mxu0 0.0
    %1091 = vmatprep.subr.mxu0 0.0
    %1092 = vmatpush2.msra.mxu0 0.0
    %1093 = vmatprep.subr.mxu0 0.0
    %1094 = vmatpush2.msra.mxu0 0.0
    %1095 = vmatprep.subr.mxu0 0.0
    %1096 = vmatpush2.msra.mxu0 0.0
    %1097 = vmatprep.mubr.f32.mxu0 0.0
    %1098 = vmatmul.mubr.f32.gmra.mxu0 %v1016
    %v1099 = vpop.f32.mrf.mxu0
    %v1100 = vadd.f32 0.0, %v1099
    %v1101 = vpop.f32.mrf.mxu0
    %1102 = vdwg.mxu0
    %v1103 = vadd.f32 %v940, %v1100
    %v1104 = vrot.slane %v205, 4
    %1106 = vmatprep.subr.mxu0 %v239
    %1107 = vmatpush1.msra.mxu0 %v238
    %1108 = vmatprep.subr.mxu0 %v237
    %1109 = vmatpush1.msra.mxu0 %v236
    %1110 = vmatprep.subr.mxu0 %v235
    %1111 = vmatpush1.msra.mxu0 %v234
    %1112 = vmatprep.subr.mxu0 %v233
    %1113 = vmatpush1.msra.mxu0 %v232
    %1114 = vmatprep.subr.mxu0 %v231
    %1115 = vmatpush1.msra.mxu0 %v230
    %1116 = vmatprep.subr.mxu0 %v229
    %1117 = vmatpush1.msra.mxu0 %v228
    %1118 = vmatprep.subr.mxu0 %v227
    %1119 = vmatpush1.msra.mxu0 %v226
    %1120 = vmatprep.subr.mxu0 %v225
    %1121 = vmatpush1.msra.mxu0 %v224
    %1122 = vmatprep.subr.mxu0 %v223
    %1123 = vmatpush1.msra.mxu0 %v222
    %1124 = vmatprep.subr.mxu0 %v221
    %1125 = vmatpush1.msra.mxu0 %v220
    %1126 = vmatprep.subr.mxu0 %v219
    %1127 = vmatpush1.msra.mxu0 %v218
    %1128 = vmatprep.subr.mxu0 %v217
    %1129 = vmatpush1.msra.mxu0 %v216
    %1130 = vmatprep.subr.mxu0 %v215
    %1131 = vmatpush1.msra.mxu0 %v214
    %1132 = vmatprep.subr.mxu0 %v213
    %1133 = vmatpush1.msra.mxu0 %v212
    %1134 = vmatprep.subr.mxu0 %v211
    %1135 = vmatpush1.msra.mxu0 %v210
    %1136 = vmatprep.subr.mxu0 %v209
    %1137 = vmatpush1.msra.mxu0 %v208
    %1138 = vmatprep.subr.mxu0 %v271
    %1139 = vmatpush2.msra.mxu0 %v270
    %1140 = vmatprep.subr.mxu0 %v269
    %1141 = vmatpush2.msra.mxu0 %v268
    %1142 = vmatprep.subr.mxu0 %v267
    %1143 = vmatpush2.msra.mxu0 %v266
    %1144 = vmatprep.subr.mxu0 %v265
    %1145 = vmatpush2.msra.mxu0 %v264
    %1146 = vmatprep.subr.mxu0 %v263
    %1147 = vmatpush2.msra.mxu0 %v262
    %1148 = vmatprep.subr.mxu0 %v261
    %1149 = vmatpush2.msra.mxu0 %v260
    %1150 = vmatprep.subr.mxu0 %v259
    %1151 = vmatpush2.msra.mxu0 %v258
    %1152 = vmatprep.subr.mxu0 %v257
    %1153 = vmatpush2.msra.mxu0 %v256
    %1154 = vmatprep.subr.mxu0 %v255
    %1155 = vmatpush2.msra.mxu0 %v254
    %1156 = vmatprep.subr.mxu0 %v253
    %1157 = vmatpush2.msra.mxu0 %v252
    %1158 = vmatprep.subr.mxu0 %v251
    %1159 = vmatpush2.msra.mxu0 %v250
    %1160 = vmatprep.subr.mxu0 %v249
    %1161 = vmatpush2.msra.mxu0 %v248
    %1162 = vmatprep.subr.mxu0 %v247
    %1163 = vmatpush2.msra.mxu0 %v246
    %1164 = vmatprep.subr.mxu0 %v245
    %1165 = vmatpush2.msra.mxu0 %v244
    %1166 = vmatprep.subr.mxu0 %v243
    %1167 = vmatpush2.msra.mxu0 %v242
    %1168 = vmatprep.subr.mxu0 %v241
    %1169 = vmatpush2.msra.mxu0 %v240
    %1170 = vmatprep.mubr.f32.mxu0 %v1016
    %1171 = vmatmul.mubr.f32.gmra.mxu0 %v1015
    %v1172 = vpop.f32.mrf.mxu0
    %v1173 = vadd.f32 %v1104, %v1172
    %v1174 = vpop.f32.mrf.mxu0
    %v1175 = vadd.f32 %v454, %v1174
    %1176 = vdwg.mxu0
    %v1177 = vtanh.pop %v1173
    %v1178 = vtanh.pop %v1175
    %v1179 = vld [vmem:[#allocation8 + $0x280] sm:$0xff]
    %v1180 = vld [vmem:[#allocation8 + $0x288] sm:$0xff]
    %v1181 = vld [vmem:[#allocation8 + $0x290] sm:$0xff]
    %v1182 = vld [vmem:[#allocation8 + $0x298] sm:$0xff]
    %v1183 = vld [vmem:[#allocation8 + $0x2a0] sm:$0xff]
    %v1184 = vld [vmem:[#allocation8 + $0x2a8] sm:$0xff]
    %v1185 = vld [vmem:[#allocation8 + $0x2b0] sm:$0xff]
    %v1186 = vld [vmem:[#allocation8 + $0x2b8] sm:$0xff]
    %v1187 = vld [vmem:[#allocation8 + $0x2c0] sm:$0xff]
    %v1188 = vld [vmem:[#allocation8 + $0x2c8] sm:$0xff]
    %v1189 = vld [vmem:[#allocation8 + $0x2d0] sm:$0xff]
    %v1190 = vld [vmem:[#allocation8 + $0x2d8] sm:$0xff]
    %v1191 = vld [vmem:[#allocation8 + $0x2e0] sm:$0xff]
    %v1192 = vld [vmem:[#allocation8 + $0x2e8] sm:$0xff]
    %v1193 = vld [vmem:[#allocation8 + $0x2f0] sm:$0xff]
    %v1194 = vld [vmem:[#allocation8 + $0x2f8] sm:$0xff]
    %1195 = vmatprep.subr.mxu0 0.0
    %1196 = vmatpush1.msra.mxu0 %v1194
    %1197 = vmatprep.subr.mxu0 0.0
    %1198 = vmatpush1.msra.mxu0 %v1193
    %1199 = vmatprep.subr.mxu0 0.0
    %1200 = vmatpush1.msra.mxu0 %v1192
    %1201 = vmatprep.subr.mxu0 0.0
    %1202 = vmatpush1.msra.mxu0 %v1191
    %1203 = vmatprep.subr.mxu0 0.0
    %1204 = vmatpush1.msra.mxu0 %v1190
    %1205 = vmatprep.subr.mxu0 0.0
    %1206 = vmatpush1.msra.mxu0 %v1189
    %1207 = vmatprep.subr.mxu0 0.0
    %1208 = vmatpush1.msra.mxu0 %v1188
    %1209 = vmatprep.subr.mxu0 0.0
    %1210 = vmatpush1.msra.mxu0 %v1187
    %1211 = vmatprep.subr.mxu0 0.0
    %1212 = vmatpush1.msra.mxu0 %v1186
    %1213 = vmatprep.subr.mxu0 0.0
    %1214 = vmatpush1.msra.mxu0 %v1185
    %1215 = vmatprep.subr.mxu0 0.0
    %1216 = vmatpush1.msra.mxu0 %v1184
    %1217 = vmatprep.subr.mxu0 0.0
    %1218 = vmatpush1.msra.mxu0 %v1183
    %1219 = vmatprep.subr.mxu0 0.0
    %1220 = vmatpush1.msra.mxu0 %v1182
    %1221 = vmatprep.subr.mxu0 0.0
    %1222 = vmatpush1.msra.mxu0 %v1181
    %1223 = vmatprep.subr.mxu0 0.0
    %1224 = vmatpush1.msra.mxu0 %v1180
    %1225 = vmatprep.subr.mxu0 0.0
    %1226 = vmatpush1.msra.mxu0 %v1179
    %1227 = vmatprep.subr.mxu0 0.0
    %1228 = vmatpush2.msra.mxu0 0.0
    %1229 = vmatprep.subr.mxu0 0.0
    %1230 = vmatpush2.msra.mxu0 0.0
    %1231 = vmatprep.subr.mxu0 0.0
    %1232 = vmatpush2.msra.mxu0 0.0
    %1233 = vmatprep.subr.mxu0 0.0
    %1234 = vmatpush2.msra.mxu0 0.0
    %1235 = vmatprep.subr.mxu0 0.0
    %1236 = vmatpush2.msra.mxu0 0.0
    %1237 = vmatprep.subr.mxu0 0.0
    %1238 = vmatpush2.msra.mxu0 0.0
    %1239 = vmatprep.subr.mxu0 0.0
    %1240 = vmatpush2.msra.mxu0 0.0
    %1241 = vmatprep.subr.mxu0 0.0
    %1242 = vmatpush2.msra.mxu0 0.0
    %1243 = vmatprep.subr.mxu0 0.0
    %1244 = vmatpush2.msra.mxu0 0.0
    %1245 = vmatprep.subr.mxu0 0.0
    %1246 = vmatpush2.msra.mxu0 0.0
    %1247 = vmatprep.subr.mxu0 0.0
    %1248 = vmatpush2.msra.mxu0 0.0
    %1249 = vmatprep.subr.mxu0 0.0
    %1250 = vmatpush2.msra.mxu0 0.0
    %1251 = vmatprep.subr.mxu0 0.0
    %1252 = vmatpush2.msra.mxu0 0.0
    %1253 = vmatprep.subr.mxu0 0.0
    %1254 = vmatpush2.msra.mxu0 0.0
    %1255 = vmatprep.subr.mxu0 0.0
    %1256 = vmatpush2.msra.mxu0 0.0
    %1257 = vmatprep.subr.mxu0 0.0
    %1258 = vmatpush2.msra.mxu0 0.0
    %1259 = vmatprep.mubr.f32.mxu0 0.0
    %1260 = vmatmul.mubr.f32.gmra.mxu0 %v1178
    %v1261 = vpop.f32.mrf.mxu0
    %v1262 = vadd.f32 0.0, %v1261
    %v1263 = vpop.f32.mrf.mxu0
    %1264 = vdwg.mxu0
    %v1265 = vadd.f32 %v1103, %v1262
    %v1266 = vrot.slane %v205, 6
    %1268 = vmatprep.subr.mxu0 %v239
    %1269 = vmatpush1.msra.mxu0 %v238
    %1270 = vmatprep.subr.mxu0 %v237
    %1271 = vmatpush1.msra.mxu0 %v236
    %1272 = vmatprep.subr.mxu0 %v235
    %1273 = vmatpush1.msra.mxu0 %v234
    %1274 = vmatprep.subr.mxu0 %v233
    %1275 = vmatpush1.msra.mxu0 %v232
    %1276 = vmatprep.subr.mxu0 %v231
    %1277 = vmatpush1.msra.mxu0 %v230
    %1278 = vmatprep.subr.mxu0 %v229
    %1279 = vmatpush1.msra.mxu0 %v228
    %1280 = vmatprep.subr.mxu0 %v227
    %1281 = vmatpush1.msra.mxu0 %v226
    %1282 = vmatprep.subr.mxu0 %v225
    %1283 = vmatpush1.msra.mxu0 %v224
    %1284 = vmatprep.subr.mxu0 %v223
    %1285 = vmatpush1.msra.mxu0 %v222
    %1286 = vmatprep.subr.mxu0 %v221
    %1287 = vmatpush1.msra.mxu0 %v220
    %1288 = vmatprep.subr.mxu0 %v219
    %1289 = vmatpush1.msra.mxu0 %v218
    %1290 = vmatprep.subr.mxu0 %v217
    %1291 = vmatpush1.msra.mxu0 %v216
    %1292 = vmatprep.subr.mxu0 %v215
    %1293 = vmatpush1.msra.mxu0 %v214
    %1294 = vmatprep.subr.mxu0 %v213
    %1295 = vmatpush1.msra.mxu0 %v212
    %1296 = vmatprep.subr.mxu0 %v211
    %1297 = vmatpush1.msra.mxu0 %v210
    %1298 = vmatprep.subr.mxu0 %v209
    %1299 = vmatpush1.msra.mxu0 %v208
    %1300 = vmatprep.subr.mxu0 %v271
    %1301 = vmatpush2.msra.mxu0 %v270
    %1302 = vmatprep.subr.mxu0 %v269
    %1303 = vmatpush2.msra.mxu0 %v268
    %1304 = vmatprep.subr.mxu0 %v267
    %1305 = vmatpush2.msra.mxu0 %v266
    %1306 = vmatprep.subr.mxu0 %v265
    %1307 = vmatpush2.msra.mxu0 %v264
    %1308 = vmatprep.subr.mxu0 %v263
    %1309 = vmatpush2.msra.mxu0 %v262
    %1310 = vmatprep.subr.mxu0 %v261
    %1311 = vmatpush2.msra.mxu0 %v260
    %1312 = vmatprep.subr.mxu0 %v259
    %1313 = vmatpush2.msra.mxu0 %v258
    %1314 = vmatprep.subr.mxu0 %v257
    %1315 = vmatpush2.msra.mxu0 %v256
    %1316 = vmatprep.subr.mxu0 %v255
    %1317 = vmatpush2.msra.mxu0 %v254
    %1318 = vmatprep.subr.mxu0 %v253
    %1319 = vmatpush2.msra.mxu0 %v252
    %1320 = vmatprep.subr.mxu0 %v251
    %1321 = vmatpush2.msra.mxu0 %v250
    %1322 = vmatprep.subr.mxu0 %v249
    %1323 = vmatpush2.msra.mxu0 %v248
    %1324 = vmatprep.subr.mxu0 %v247
    %1325 = vmatpush2.msra.mxu0 %v246
    %1326 = vmatprep.subr.mxu0 %v245
    %1327 = vmatpush2.msra.mxu0 %v244
    %1328 = vmatprep.subr.mxu0 %v243
    %1329 = vmatpush2.msra.mxu0 %v242
    %1330 = vmatprep.subr.mxu0 %v241
    %1331 = vmatpush2.msra.mxu0 %v240
    %1332 = vmatprep.mubr.f32.mxu0 %v1178
    %1333 = vmatmul.mubr.f32.gmra.mxu0 %v1177
    %v1334 = vpop.f32.mrf.mxu0
    %v1335 = vadd.f32 %v1266, %v1334
    %v1336 = vpop.f32.mrf.mxu0
    %v1337 = vadd.f32 %v618, %v1336
    %1338 = vdwg.mxu0
    %v1339 = vtanh.pop %v1335
    %v1340 = vtanh.pop %v1337
    %v1341 = vld [vmem:[#allocation8 + $0x300] sm:$0xff]
    %v1342 = vld [vmem:[#allocation8 + $0x308] sm:$0xff]
    %v1343 = vld [vmem:[#allocation8 + $0x310] sm:$0xff]
    %v1344 = vld [vmem:[#allocation8 + $0x318] sm:$0xff]
    %v1345 = vld [vmem:[#allocation8 + $0x320] sm:$0xff]
    %v1346 = vld [vmem:[#allocation8 + $0x328] sm:$0xff]
    %v1347 = vld [vmem:[#allocation8 + $0x330] sm:$0xff]
    %v1348 = vld [vmem:[#allocation8 + $0x338] sm:$0xff]
    %v1349 = vld [vmem:[#allocation8 + $0x340] sm:$0xff]
    %v1350 = vld [vmem:[#allocation8 + $0x348] sm:$0xff]
    %v1351 = vld [vmem:[#allocation8 + $0x350] sm:$0xff]
    %v1352 = vld [vmem:[#allocation8 + $0x358] sm:$0xff]
    %v1353 = vld [vmem:[#allocation8 + $0x360] sm:$0xff]
    %v1354 = vld [vmem:[#allocation8 + $0x368] sm:$0xff]
    %v1355 = vld [vmem:[#allocation8 + $0x370] sm:$0xff]
    %v1356 = vld [vmem:[#allocation8 + $0x378] sm:$0xff]
    %1357 = vmatprep.subr.mxu0 0.0
    %1358 = vmatpush1.msra.mxu0 %v1356
    %1359 = vmatprep.subr.mxu0 0.0
    %1360 = vmatpush1.msra.mxu0 %v1355
    %1361 = vmatprep.subr.mxu0 0.0
    %1362 = vmatpush1.msra.mxu0 %v1354
    %1363 = vmatprep.subr.mxu0 0.0
    %1364 = vmatpush1.msra.mxu0 %v1353
    %1365 = vmatprep.subr.mxu0 0.0
    %1366 = vmatpush1.msra.mxu0 %v1352
    %1367 = vmatprep.subr.mxu0 0.0
    %1368 = vmatpush1.msra.mxu0 %v1351
    %1369 = vmatprep.subr.mxu0 0.0
    %1370 = vmatpush1.msra.mxu0 %v1350
    %1371 = vmatprep.subr.mxu0 0.0
    %1372 = vmatpush1.msra.mxu0 %v1349
    %1373 = vmatprep.subr.mxu0 0.0
    %1374 = vmatpush1.msra.mxu0 %v1348
    %1375 = vmatprep.subr.mxu0 0.0
    %1376 = vmatpush1.msra.mxu0 %v1347
    %1377 = vmatprep.subr.mxu0 0.0
    %1378 = vmatpush1.msra.mxu0 %v1346
    %1379 = vmatprep.subr.mxu0 0.0
    %1380 = vmatpush1.msra.mxu0 %v1345
    %1381 = vmatprep.subr.mxu0 0.0
    %1382 = vmatpush1.msra.mxu0 %v1344
    %1383 = vmatprep.subr.mxu0 0.0
    %1384 = vmatpush1.msra.mxu0 %v1343
    %1385 = vmatprep.subr.mxu0 0.0
    %1386 = vmatpush1.msra.mxu0 %v1342
    %1387 = vmatprep.subr.mxu0 0.0
    %1388 = vmatpush1.msra.mxu0 %v1341
    %1389 = vmatprep.subr.mxu0 0.0
    %1390 = vmatpush2.msra.mxu0 0.0
    %1391 = vmatprep.subr.mxu0 0.0
    %1392 = vmatpush2.msra.mxu0 0.0
    %1393 = vmatprep.subr.mxu0 0.0
    %1394 = vmatpush2.msra.mxu0 0.0
    %1395 = vmatprep.subr.mxu0 0.0
    %1396 = vmatpush2.msra.mxu0 0.0
    %1397 = vmatprep.subr.mxu0 0.0
    %1398 = vmatpush2.msra.mxu0 0.0
    %1399 = vmatprep.subr.mxu0 0.0
    %1400 = vmatpush2.msra.mxu0 0.0
    %1401 = vmatprep.subr.mxu0 0.0
    %1402 = vmatpush2.msra.mxu0 0.0
    %1403 = vmatprep.subr.mxu0 0.0
    %1404 = vmatpush2.msra.mxu0 0.0
    %1405 = vmatprep.subr.mxu0 0.0
    %1406 = vmatpush2.msra.mxu0 0.0
    %1407 = vmatprep.subr.mxu0 0.0
    %1408 = vmatpush2.msra.mxu0 0.0
    %1409 = vmatprep.subr.mxu0 0.0
    %1410 = vmatpush2.msra.mxu0 0.0
    %1411 = vmatprep.subr.mxu0 0.0
    %1412 = vmatpush2.msra.mxu0 0.0
    %1413 = vmatprep.subr.mxu0 0.0
    %1414 = vmatpush2.msra.mxu0 0.0
    %1415 = vmatprep.subr.mxu0 0.0
    %1416 = vmatpush2.msra.mxu0 0.0
    %1417 = vmatprep.subr.mxu0 0.0
    %1418 = vmatpush2.msra.mxu0 0.0
    %1419 = vmatprep.subr.mxu0 0.0
    %1420 = vmatpush2.msra.mxu0 0.0
    %1421 = vmatprep.mubr.f32.mxu0 0.0
    %1422 = vmatmul.mubr.f32.gmra.mxu0 %v1340
    %v1423 = vpop.f32.mrf.mxu0
    %v1424 = vadd.f32 0.0, %v1423
    %v1425 = vpop.f32.mrf.mxu0
    %1426 = vdwg.mxu0
    %v1427 = vadd.f32 %v1265, %v1424
    %1428 = vmatprep.subr.mxu0 %v239
    %1429 = vmatpush1.msra.mxu0 %v238
    %1430 = vmatprep.subr.mxu0 %v237
    %1431 = vmatpush1.msra.mxu0 %v236
    %1432 = vmatprep.subr.mxu0 %v235
    %1433 = vmatpush1.msra.mxu0 %v234
    %1434 = vmatprep.subr.mxu0 %v233
    %1435 = vmatpush1.msra.mxu0 %v232
    %1436 = vmatprep.subr.mxu0 %v231
    %1437 = vmatpush1.msra.mxu0 %v230
    %1438 = vmatprep.subr.mxu0 %v229
    %1439 = vmatpush1.msra.mxu0 %v228
    %1440 = vmatprep.subr.mxu0 %v227
    %1441 = vmatpush1.msra.mxu0 %v226
    %1442 = vmatprep.subr.mxu0 %v225
    %1443 = vmatpush1.msra.mxu0 %v224
    %1444 = vmatprep.subr.mxu0 %v223
    %1445 = vmatpush1.msra.mxu0 %v222
    %1446 = vmatprep.subr.mxu0 %v221
    %1447 = vmatpush1.msra.mxu0 %v220
    %1448 = vmatprep.subr.mxu0 %v219
    %1449 = vmatpush1.msra.mxu0 %v218
    %1450 = vmatprep.subr.mxu0 %v217
    %1451 = vmatpush1.msra.mxu0 %v216
    %1452 = vmatprep.subr.mxu0 %v215
    %1453 = vmatpush1.msra.mxu0 %v214
    %1454 = vmatprep.subr.mxu0 %v213
    %1455 = vmatpush1.msra.mxu0 %v212
    %1456 = vmatprep.subr.mxu0 %v211
    %1457 = vmatpush1.msra.mxu0 %v210
    %1458 = vmatprep.subr.mxu0 %v209
    %1459 = vmatpush1.msra.mxu0 %v208
    %1460 = vmatprep.subr.mxu0 %v271
    %1461 = vmatpush2.msra.mxu0 %v270
    %1462 = vmatprep.subr.mxu0 %v269
    %1463 = vmatpush2.msra.mxu0 %v268
    %1464 = vmatprep.subr.mxu0 %v267
    %1465 = vmatpush2.msra.mxu0 %v266
    %1466 = vmatprep.subr.mxu0 %v265
    %1467 = vmatpush2.msra.mxu0 %v264
    %1468 = vmatprep.subr.mxu0 %v263
    %1469 = vmatpush2.msra.mxu0 %v262
    %1470 = vmatprep.subr.mxu0 %v261
    %1471 = vmatpush2.msra.mxu0 %v260
    %1472 = vmatprep.subr.mxu0 %v259
    %1473 = vmatpush2.msra.mxu0 %v258
    %1474 = vmatprep.subr.mxu0 %v257
    %1475 = vmatpush2.msra.mxu0 %v256
    %1476 = vmatprep.subr.mxu0 %v255
    %1477 = vmatpush2.msra.mxu0 %v254
    %1478 = vmatprep.subr.mxu0 %v253
    %1479 = vmatpush2.msra.mxu0 %v252
    %1480 = vmatprep.subr.mxu0 %v251
    %1481 = vmatpush2.msra.mxu0 %v250
    %1482 = vmatprep.subr.mxu0 %v249
    %1483 = vmatpush2.msra.mxu0 %v248
    %1484 = vmatprep.subr.mxu0 %v247
    %1485 = vmatpush2.msra.mxu0 %v246
    %1486 = vmatprep.subr.mxu0 %v245
    %1487 = vmatpush2.msra.mxu0 %v244
    %1488 = vmatprep.subr.mxu0 %v243
    %1489 = vmatpush2.msra.mxu0 %v242
    %1490 = vmatprep.subr.mxu0 %v241
    %1491 = vmatpush2.msra.mxu0 %v240
    %1492 = vmatprep.mubr.f32.mxu0 %v1340
    %1493 = vmatmul.mubr.f32.gmra.mxu0 %v1339
    %v1494 = vpop.f32.mrf.mxu0
    %v1495 = vpop.f32.mrf.mxu0
    %v1496 = vadd.f32 %v277, %v1495
    %1497 = vdwg.mxu0
    %v1498 = vtanh.pop %v1496
    %v1499 = vld [vmem:[#allocation8 + $0x380] sm:$0xff]
    %v1500 = vld [vmem:[#allocation8 + $0x388] sm:$0xff]
    %v1501 = vld [vmem:[#allocation8 + $0x390] sm:$0xff]
    %v1502 = vld [vmem:[#allocation8 + $0x398] sm:$0xff]
    %v1503 = vld [vmem:[#allocation8 + $0x3a0] sm:$0xff]
    %v1504 = vld [vmem:[#allocation8 + $0x3a8] sm:$0xff]
    %v1505 = vld [vmem:[#allocation8 + $0x3b0] sm:$0xff]
    %v1506 = vld [vmem:[#allocation8 + $0x3b8] sm:$0xff]
    %v1507 = vld [vmem:[#allocation8 + $0x3c0] sm:$0xff]
    %v1508 = vld [vmem:[#allocation8 + $0x3c8] sm:$0xff]
    %v1509 = vld [vmem:[#allocation8 + $0x3d0] sm:$0xff]
    %v1510 = vld [vmem:[#allocation8 + $0x3d8] sm:$0xff]
    %v1511 = vld [vmem:[#allocation8 + $0x3e0] sm:$0xff]
    %v1512 = vld [vmem:[#allocation8 + $0x3e8] sm:$0xff]
    %v1513 = vld [vmem:[#allocation8 + $0x3f0] sm:$0xff]
    %v1514 = vld [vmem:[#allocation8 + $0x3f8] sm:$0xff]
    %1515 = vmatprep.subr.mxu0 0.0
    %1516 = vmatpush1.msra.mxu0 %v1514
    %1517 = vmatprep.subr.mxu0 0.0
    %1518 = vmatpush1.msra.mxu0 %v1513
    %1519 = vmatprep.subr.mxu0 0.0
    %1520 = vmatpush1.msra.mxu0 %v1512
    %1521 = vmatprep.subr.mxu0 0.0
    %1522 = vmatpush1.msra.mxu0 %v1511
    %1523 = vmatprep.subr.mxu0 0.0
    %1524 = vmatpush1.msra.mxu0 %v1510
    %1525 = vmatprep.subr.mxu0 0.0
    %1526 = vmatpush1.msra.mxu0 %v1509
    %1527 = vmatprep.subr.mxu0 0.0
    %1528 = vmatpush1.msra.mxu0 %v1508
    %1529 = vmatprep.subr.mxu0 0.0
    %1530 = vmatpush1.msra.mxu0 %v1507
    %1531 = vmatprep.subr.mxu0 0.0
    %1532 = vmatpush1.msra.mxu0 %v1506
    %1533 = vmatprep.subr.mxu0 0.0
    %1534 = vmatpush1.msra.mxu0 %v1505
    %1535 = vmatprep.subr.mxu0 0.0
    %1536 = vmatpush1.msra.mxu0 %v1504
    %1537 = vmatprep.subr.mxu0 0.0
    %1538 = vmatpush1.msra.mxu0 %v1503
    %1539 = vmatprep.subr.mxu0 0.0
    %1540 = vmatpush1.msra.mxu0 %v1502
    %1541 = vmatprep.subr.mxu0 0.0
    %1542 = vmatpush1.msra.mxu0 %v1501
    %1543 = vmatprep.subr.mxu0 0.0
    %1544 = vmatpush1.msra.mxu0 %v1500
    %1545 = vmatprep.subr.mxu0 0.0
    %1546 = vmatpush1.msra.mxu0 %v1499
    %1547 = vmatprep.subr.mxu0 0.0
    %1548 = vmatpush2.msra.mxu0 0.0
    %1549 = vmatprep.subr.mxu0 0.0
    %1550 = vmatpush2.msra.mxu0 0.0
    %1551 = vmatprep.subr.mxu0 0.0
    %1552 = vmatpush2.msra.mxu0 0.0
    %1553 = vmatprep.subr.mxu0 0.0
    %1554 = vmatpush2.msra.mxu0 0.0
    %1555 = vmatprep.subr.mxu0 0.0
    %1556 = vmatpush2.msra.mxu0 0.0
    %1557 = vmatprep.subr.mxu0 0.0
    %1558 = vmatpush2.msra.mxu0 0.0
    %1559 = vmatprep.subr.mxu0 0.0
    %1560 = vmatpush2.msra.mxu0 0.0
    %1561 = vmatprep.subr.mxu0 0.0
    %1562 = vmatpush2.msra.mxu0 0.0
    %1563 = vmatprep.subr.mxu0 0.0
    %1564 = vmatpush2.msra.mxu0 0.0
    %1565 = vmatprep.subr.mxu0 0.0
    %1566 = vmatpush2.msra.mxu0 0.0
    %1567 = vmatprep.subr.mxu0 0.0
    %1568 = vmatpush2.msra.mxu0 0.0
    %1569 = vmatprep.subr.mxu0 0.0
    %1570 = vmatpush2.msra.mxu0 0.0
    %1571 = vmatprep.subr.mxu0 0.0
    %1572 = vmatpush2.msra.mxu0 0.0
    %1573 = vmatprep.subr.mxu0 0.0
    %1574 = vmatpush2.msra.mxu0 0.0
    %1575 = vmatprep.subr.mxu0 0.0
    %1576 = vmatpush2.msra.mxu0 0.0
    %1577 = vmatprep.subr.mxu0 0.0
    %1578 = vmatpush2.msra.mxu0 0.0
    %1579 = vmatprep.mubr.f32.mxu0 0.0
    %1580 = vmatmul.mubr.f32.gmra.mxu0 %v1498
    %v1581 = vpop.f32.mrf.mxu0
    %v1582 = vadd.f32 0.0, %v1581
    %v1583 = vpop.f32.mrf.mxu0
    %1584 = vdwg.mxu0
    %v1585 = vadd.f32 %v1427, %v1582
    %v1586 = vmax.f32 %v1585, 0.0
    %v1587 = vld [vmem:[#allocation10] sm:$0xff]
    %v1588 = vld [vmem:[#allocation10 + $0x8] sm:$0xff]
    %v1589 = vld [vmem:[#allocation10 + $0x10] sm:$0xff]
    %v1590 = vld [vmem:[#allocation10 + $0x18] sm:$0xff]
    %v1591 = vld [vmem:[#allocation10 + $0x20] sm:$0xff]
    %v1592 = vld [vmem:[#allocation10 + $0x28] sm:$0xff]
    %v1593 = vld [vmem:[#allocation10 + $0x30] sm:$0xff]
    %v1594 = vld [vmem:[#allocation10 + $0x38] sm:$0xff]
    %v1595 = vld [vmem:[#allocation10 + $0x40] sm:$0xff]
    %v1596 = vld [vmem:[#allocation10 + $0x48] sm:$0xff]
    %v1597 = vld [vmem:[#allocation10 + $0x50] sm:$0xff]
    %v1598 = vld [vmem:[#allocation10 + $0x58] sm:$0xff]
    %v1599 = vld [vmem:[#allocation10 + $0x60] sm:$0xff]
    %v1600 = vld [vmem:[#allocation10 + $0x68] sm:$0xff]
    %v1601 = vld [vmem:[#allocation10 + $0x70] sm:$0xff]
    %v1602 = vld [vmem:[#allocation10 + $0x78] sm:$0xff]
    %v1603 = vld [vmem:[%s8] sm:$0x1]
    %v1605 = vlaneseq
    %v1606 = vshrl.u32 %v1605, 7
    %v1607 = vsub.s32 0, %v1606
    %v1608 = vrot.slane %v1603, %v1607
    %1610 = vmatprep.subr.mxu0 0.0
    %1611 = vmatpush1.msra.mxu0 %v1602
    %1612 = vmatprep.subr.mxu0 0.0
    %1613 = vmatpush1.msra.mxu0 %v1601
    %1614 = vmatprep.subr.mxu0 0.0
    %1615 = vmatpush1.msra.mxu0 %v1600
    %1616 = vmatprep.subr.mxu0 0.0
    %1617 = vmatpush1.msra.mxu0 %v1599
    %1618 = vmatprep.subr.mxu0 0.0
    %1619 = vmatpush1.msra.mxu0 %v1598
    %1620 = vmatprep.subr.mxu0 0.0
    %1621 = vmatpush1.msra.mxu0 %v1597
    %1622 = vmatprep.subr.mxu0 0.0
    %1623 = vmatpush1.msra.mxu0 %v1596
    %1624 = vmatprep.subr.mxu0 0.0
    %1625 = vmatpush1.msra.mxu0 %v1595
    %1626 = vmatprep.subr.mxu0 0.0
    %1627 = vmatpush1.msra.mxu0 %v1594
    %1628 = vmatprep.subr.mxu0 0.0
    %1629 = vmatpush1.msra.mxu0 %v1593
    %1630 = vmatprep.subr.mxu0 0.0
    %1631 = vmatpush1.msra.mxu0 %v1592
    %1632 = vmatprep.subr.mxu0 0.0
    %1633 = vmatpush1.msra.mxu0 %v1591
    %1634 = vmatprep.subr.mxu0 0.0
    %1635 = vmatpush1.msra.mxu0 %v1590
    %1636 = vmatprep.subr.mxu0 0.0
    %1637 = vmatpush1.msra.mxu0 %v1589
    %1638 = vmatprep.subr.mxu0 0.0
    %1639 = vmatpush1.msra.mxu0 %v1588
    %1640 = vmatprep.subr.mxu0 0.0
    %1641 = vmatpush1.msra.mxu0 %v1587
    %1642 = vmatprep.subr.mxu0 0.0
    %1643 = vmatpush2.msra.mxu0 0.0
    %1644 = vmatprep.subr.mxu0 0.0
    %1645 = vmatpush2.msra.mxu0 0.0
    %1646 = vmatprep.subr.mxu0 0.0
    %1647 = vmatpush2.msra.mxu0 0.0
    %1648 = vmatprep.subr.mxu0 0.0
    %1649 = vmatpush2.msra.mxu0 0.0
    %1650 = vmatprep.subr.mxu0 0.0
    %1651 = vmatpush2.msra.mxu0 0.0
    %1652 = vmatprep.subr.mxu0 0.0
    %1653 = vmatpush2.msra.mxu0 0.0
    %1654 = vmatprep.subr.mxu0 0.0
    %1655 = vmatpush2.msra.mxu0 0.0
    %1656 = vmatprep.subr.mxu0 0.0
    %1657 = vmatpush2.msra.mxu0 0.0
    %1658 = vmatprep.subr.mxu0 0.0
    %1659 = vmatpush2.msra.mxu0 0.0
    %1660 = vmatprep.subr.mxu0 0.0
    %1661 = vmatpush2.msra.mxu0 0.0
    %1662 = vmatprep.subr.mxu0 0.0
    %1663 = vmatpush2.msra.mxu0 0.0
    %1664 = vmatprep.subr.mxu0 0.0
    %1665 = vmatpush2.msra.mxu0 0.0
    %1666 = vmatprep.subr.mxu0 0.0
    %1667 = vmatpush2.msra.mxu0 0.0
    %1668 = vmatprep.subr.mxu0 0.0
    %1669 = vmatpush2.msra.mxu0 0.0
    %1670 = vmatprep.subr.mxu0 0.0
    %1671 = vmatpush2.msra.mxu0 0.0
    %1672 = vmatprep.subr.mxu0 0.0
    %1673 = vmatpush2.msra.mxu0 0.0
    %1674 = vmatprep.mubr.f32.mxu0 0.0
    %1675 = vmatmul.mubr.f32.gmra.mxu0 %v1586
    %v1676 = vpop.f32.mrf.mxu0
    %v1677 = vadd.f32 %v1608, %v1676
    %v1678 = vpop.f32.mrf.mxu0
    %1679 = vdwg.mxu0
    %v1680 = vmax.f32 %v1677, 0.0
    %v1681 = vld [vmem:[%s9] sm:$0x1]
    %v1683 = vlaneseq
    %v1684 = vshrl.u32 %v1683, 7
    %v1685 = vsub.s32 0, %v1684
    %v1686 = vrot.slane %v1681, %v1685
    %v1688 = vmul.f32 %v1680, %v1686
    %vm1689 = vcmask 1041408
    %v1690 = vsel %vm1689, %v1688, 0.0
    %1691 = vadd.xlane.f32.xlu0 %v1690
    %v1692 = vpop.xlane.xlu0 %1691
    %v1693 = vld [vmem:[#allocation2] sm:$0x1]
    %v1695 = vlaneseq
    %v1696 = vshrl.u32 %v1695, 7
    %v1697 = vsub.s32 0, %v1696
    %v1698 = vrot.slane %v1693, %v1697
    %v1700 = vadd.f32 %v1692, %v1698
    %vm1701 = vcmask 1024
    %1702 = vst.msk [vmem:[%s11] sm:$0x3] %vm1701, %v1700
    // Predicated region
    $region66: #{tpu_custom_call.1} parent=1 // pred_check
      _
    $region67: #{tpu_custom_call.1} parent=1 // pred_check_branch
      %1704 = sbr.rel (0) target = $region69
    $region68: #{tpu_custom_call.1} parent=1 // pred_region
      _
    $region69: #{tpu_custom_call.1} parent=1 // pred_fallthru
      _
    // Predicated region
    $region70: #{tpu_custom_call.1} parent=1 // pred_check
      _
    $region71: #{tpu_custom_call.1} parent=1 // pred_check_branch
      %1706 = sbr.rel (0) target = $region73
    $region72: #{tpu_custom_call.1} parent=1 // pred_region
      _
    $region73: #{tpu_custom_call.1} parent=1 // pred_fallthru
      _
    %1707 = vsyncpa [#allocation4], 1
    %1708 = vsyncpa [#allocation6], 1
    %1709 = vsyncpa [#allocation9], 1

</llo_original>
